<compile_context>
chip_gen: v7x
topology: tpu7x:2x2x1
jax: 0.10.0
libtpu: 0.0.40
codegen_flags: <defaults>
</compile_context>

<pallas_src>
import jax
import jax.numpy as jnp
from jax.experimental import pallas as pl
from jax.experimental.pallas import tpu as pltpu

LRELU_SLOPE = 0.1
_BIAS_ROWS = 16          # all-ones rows used to fold the bias into the matmul
_HALO_LANES = 128        # lane-aligned halo block width


def _leaky_relu(z):
    return jnp.where(z >= 0, z, LRELU_SLOPE * z)


def _pick_time_tile(T, max_tile):
    """Largest multiple of 128 that divides T, capped at max_tile (else T)."""
    best = None
    cand = 128
    while cand <= min(T, max_tile):
        if T % cand == 0:
            best = cand
        cand += 128
    return best if best is not None else T


def _augment_weight(w, b, dtype):
    """(C_out, C_in, K) conv weight + bias -> (C_out, K*C_in + _BIAS_ROWS)."""
    C_out, C_in, K = w.shape
    # column k*C_in + c_in multiplies input channel c_in at tap k
    wf = jnp.transpose(w, (0, 2, 1)).reshape(C_out, K * C_in)
    pad = jnp.zeros((C_out, _BIAS_ROWS - 1), wf.dtype)
    return jnp.concatenate([wf, b.reshape(C_out, 1), pad], axis=1).astype(dtype)


def _make_mrf_kernel(C, K, dilation, T_tile, halo, pad1, pad2, compute_dtype):
    H = pad1 + pad2            # input halo needed per side
    T1 = T_tile + 2 * pad2     # conv1 output length (carries conv2's halo)
    base = halo - H            # offset of the needed span inside the window

    def kernel(l_ref, x_ref, r_ref, w1_ref, w2_ref, o_ref):
        # l_ref/r_ref : (1, C, halo)   halo blocks (clamped at global edges)
        # x_ref       : (1, C, T_tile) centre tile (also the residual)
        # w*_ref      : (C, K*C + 16)  fused (taps || bias || 0) weight matrix
        # o_ref       : (1, C, T_tile)
        t = pl.program_id(1)
        nt = pl.num_programs(1)

        xc = x_ref[0]                                        # (C, T_tile)
        # Zero the halos at the global signal edges (conv1 zero padding).
        lh = jnp.where(t == 0, jnp.zeros_like(l_ref[0]), l_ref[0])
        rh = jnp.where(t == nt - 1, jnp.zeros_like(r_ref[0]), r_ref[0])

        # Lane-aligned window over x[t*T_tile - halo : (t+1)*T_tile + halo].
        win = jnp.concatenate([lh, xc, rh], axis=-1)         # (C, T_tile + 2*halo)
        a = _leaky_relu(win.astype(jnp.float32)).astype(compute_dtype)

        # ---- conv1 (dilated) as a single fused MXU matmul --------------------
        ones1 = jnp.ones((_BIAS_ROWS, T1), compute_dtype)
        a1 = jnp.concatenate(
            [a[:, base + k * dilation: base + k * dilation + T1] for k in range(K)]
            + [ones1],
            axis=0)                                          # (K*C + 16, T1)
        h = jnp.dot(w1_ref[...], a1,
                    preferred_element_type=jnp.float32)      # (C, T1)

        # conv2 zero-pads conv1's length-T output: kill columns that fall
        # outside [0, T) at the global edges.
        jj = jax.lax.broadcasted_iota(jnp.int32, (1, T1), 1)
        keep = jnp.logical_and(
            jnp.logical_or(t > 0, jj >= pad2),
            jnp.logical_or(t < nt - 1, jj < T_tile + pad2))
        g = jnp.where(keep, _leaky_relu(h), 0.0).astype(compute_dtype)

        # ---- conv2 (dilation 1) as a single fused MXU matmul -----------------
        ones2 = jnp.ones((_BIAS_ROWS, T_tile), compute_dtype)
        a2 = jnp.concatenate(
            [g[:, k: k + T_tile] for k in range(K)] + [ones2], axis=0)
        y = jnp.dot(w2_ref[...], a2,
                    preferred_element_type=jnp.float32)      # (C, T_tile)

        # ---- residual add ----------------------------------------------------
        o_ref[0] = (xc.astype(jnp.float32) + y).astype(o_ref.dtype)

    return kernel


def mrf_layer_forward(x, w1, b1, w2, b2, dilation, *,
                      compute_dtype=jnp.bfloat16, max_time_tile=512):
    """x: (B, C, T); w*: (C_out, C_in, K) effective (weight-normed) weights."""
    B, C, T = x.shape
    K = w1.shape[-1]
    assert K % 2 == 1, "HiFi-GAN MRF padding formulas assume odd kernel sizes"
    pad1 = (K * dilation - dilation) // 2
    pad2 = K // 2
    H = pad1 + pad2

    T_tile = _pick_time_tile(T, max_time_tile)
    nt = T // T_tile
    halo = _HALO_LANES if (T % _HALO_LANES == 0) else T
    assert T_tile % halo == 0 and H <= halo, (T_tile, halo, H)
    rpt = T_tile // halo          # halo blocks per time tile
    nhb = T // halo               # total halo blocks along T

    w1a = _augment_weight(w1.astype(jnp.float32), b1.astype(jnp.float32), compute_dtype)
    w2a = _augment_weight(w2.astype(jnp.float32), b2.astype(jnp.float32), compute_dtype)
    kc = K * C + _BIAS_ROWS

    kernel = _make_mrf_kernel(C, K, dilation, T_tile, halo, pad1, pad2, compute_dtype)

    # VMEM budget: double-buffered in/out tiles + resident weights + im2col tmp.
    isz = jnp.dtype(x.dtype).itemsize
    csz = jnp.dtype(compute_dtype).itemsize
    est = (2 * (2 * C * T_tile + 2 * C * halo) * isz      # pipelined x/halos/out
           + 2 * C * kc * csz                             # fused weights
           + 2 * kc * (T_tile + 2 * pad2) * csz           # im2col operands
           + 4 * C * (T_tile + 2 * halo) * 4)             # f32 temporaries
    vmem_limit = int(min(64 * 1024 * 1024, max(32 * 1024 * 1024, 2 * est)))

    grid_spec = pltpu.PrefetchScalarGridSpec(
        num_scalar_prefetch=0,
        grid=(B, nt),
        in_specs=[
            # left halo (index clamped at the left edge; zero-masked in kernel)
            pl.BlockSpec((1, C, halo),
                         lambda b, t: (b, 0, jnp.maximum(t * rpt - 1, 0))),
            # centre tile (also the residual)
            pl.BlockSpec((1, C, T_tile), lambda b, t: (b, 0, t)),
            # right halo (index clamped at the right edge; zero-masked in kernel)
            pl.BlockSpec((1, C, halo),
                         lambda b, t: (b, 0, jnp.minimum((t + 1) * rpt, nhb - 1))),
            pl.BlockSpec((C, kc), lambda b, t: (0, 0)),    # fused conv1 weight
            pl.BlockSpec((C, kc), lambda b, t: (0, 0)),    # fused conv2 weight
        ],
        out_specs=pl.BlockSpec((1, C, T_tile), lambda b, t: (b, 0, t)),
    )

    return pl.pallas_call(
        kernel,
        out_shape=jax.ShapeDtypeStruct((B, C, T), x.dtype),
        grid_spec=grid_spec,
        compiler_params=pltpu.CompilerParams(
            dimension_semantics=("parallel", "parallel"),
            vmem_limit_bytes=vmem_limit,
        ),
    )(x, x, x, w1a, w2a)


def _weight_norm_effective(v, g):
    """w = g * v / ||v||, norm taken over (C_in, K) per output channel."""
    norm = jnp.sqrt(jnp.sum(v * v, axis=(1, 2), keepdims=True))
    return g.reshape(-1, 1, 1) * v / norm


def _reference_forward(x, w1, b1, w2, b2, dilation):
    """Pure-JAX reference (lax.conv_general_dilated) mirroring the PyTorch module."""
    K = w1.shape[-1]
    pad1 = (K * dilation - dilation) // 2
    pad2 = K // 2
    dn = ("NCH", "OIH", "NCH")

    def conv(inp, w, b, pad, dil):
        out = jax.lax.conv_general_dilated(
            inp, w, window_strides=(1,), padding=[(pad, pad)],
            rhs_dilation=(dil,), dimension_numbers=dn,
            precision=jax.lax.Precision.HIGHEST,
        )
        return out + b.reshape(1, -1, 1)

    h = conv(_leaky_relu(x), w1, b1, pad1, dilation)
    y = conv(_leaky_relu(h), w2, b2, pad2, 1)
    return x + y


if __name__ == "__main__":
    # MRFLayer(channels=32, kernel_size=3, dilation=2); 3 time tiles of 512 so
    # both interior halo exchange and both global edges are exercised.
    B, C, T = 2, 32, 1536
    K, DIL = 3, 2

    key = jax.random.PRNGKey(0)
    kx, kv1, kg1, kb1, kv2, kg2, kb2 = jax.random.split(key, 7)

    x = jax.random.normal(kx, (B, C, T), dtype=jnp.float32)

    # Weight-normed Conv1d parameters: v (C_out, C_in, K), g (C_out,), bias (C_out,)
    v1 = jax.random.normal(kv1, (C, C, K), dtype=jnp.float32) * 0.1
    g1 = 0.5 + jax.random.uniform(kg1, (C,), dtype=jnp.float32)
    b1 = jax.random.normal(kb1, (C,), dtype=jnp.float32) * 0.05
    v2 = jax.random.normal(kv2, (C, C, K), dtype=jnp.float32) * 0.1
    g2 = 0.5 + jax.random.uniform(kg2, (C,), dtype=jnp.float32)
    b2 = jax.random.normal(kb2, (C,), dtype=jnp.float32) * 0.05

    w1 = _weight_norm_effective(v1, g1)   # effective conv1 weight
    w2 = _weight_norm_effective(v2, g2)   # effective conv2 weight

    ref = _reference_forward(x, w1, b1, w2, b2, DIL)

    # f32 MXU path: tight correctness check.
    out_f32 = jax.block_until_ready(
        mrf_layer_forward(x, w1, b1, w2, b2, DIL, compute_dtype=jnp.float32))
    assert out_f32.shape == (B, C, T)
    err_f32 = float(jnp.max(jnp.abs(out_f32 - ref)))
    assert jnp.allclose(out_f32, ref, rtol=2e-3, atol=2e-3), err_f32

    # bf16 MXU operands with f32 accumulation (perf default on v6e/v7x): loose check.
    out_bf16 = jax.block_until_ready(
        mrf_layer_forward(x, w1, b1, w2, b2, DIL, compute_dtype=jnp.bfloat16))
    err_bf16 = float(jnp.max(jnp.abs(out_bf16 - ref)))
    assert jnp.allclose(out_bf16, ref, rtol=5e-2, atol=8e-2), err_bf16

    print("KERNEL_OK")
</pallas_src>

<mosaic_0001>
module attributes {stable_mosaic.version = 11 : i64} {
  func.func @kernel(%arg0: i32, %arg1: i32, %arg2: memref<1x32x128xf32, #tpu.memory_space<vmem>>, %arg3: memref<1x32x512xf32, #tpu.memory_space<vmem>>, %arg4: memref<1x32x128xf32, #tpu.memory_space<vmem>>, %arg5: memref<32x112xf32, #tpu.memory_space<vmem>>, %arg6: memref<32x112xf32, #tpu.memory_space<vmem>>, %arg7: memref<1x32x512xf32, #tpu.memory_space<vmem>>) attributes {dimension_semantics = [#tpu.dimension_semantics<parallel>, #tpu.dimension_semantics<parallel>], iteration_bounds = array<i64: 2, 3>, scalar_prefetch = 0 : i64, scratch_operands = 0 : i64, tpu.core_type = #tpu.core_type<tc>, window_params = [{transform_indices = @transform_0, window_bounds = array<i64: 1, 32, 128>}, {transform_indices = @transform_1, window_bounds = array<i64: 1, 32, 512>}, {transform_indices = @transform_2, window_bounds = array<i64: 1, 32, 128>}, {pipeline_mode = #tpu.pipeline_mode<synchronous>, transform_indices = @transform_3, window_bounds = array<i64: 32, 112>}, {pipeline_mode = #tpu.pipeline_mode<synchronous>, transform_indices = @transform_4, window_bounds = array<i64: 32, 112>}, {transform_indices = @transform_5, window_bounds = array<i64: 1, 32, 512>}]} {
    %c0 = arith.constant 0 : index
    %c0_0 = arith.constant 0 : index
    %c0_1 = arith.constant 0 : index
    %0 = vector.load %arg3[%c0, %c0_0, %c0_1] : memref<1x32x512xf32, #tpu.memory_space<vmem>>, vector<1x32x512xf32>
    %1 = vector.shape_cast %0 : vector<1x32x512xf32> to vector<32x512xf32>
    %c0_i32 = arith.constant 0 : i32
    %2 = arith.cmpi eq, %arg1, %c0_i32 : i32
    %cst = arith.constant 0.000000e+00 : f32
    %3 = vector.broadcast %cst : f32 to vector<32x128xf32>
    %c0_2 = arith.constant 0 : index
    %c0_3 = arith.constant 0 : index
    %c0_4 = arith.constant 0 : index
    %4 = vector.load %arg2[%c0_2, %c0_3, %c0_4] : memref<1x32x128xf32, #tpu.memory_space<vmem>>, vector<1x32x128xf32>
    %5 = vector.shape_cast %4 : vector<1x32x128xf32> to vector<32x128xf32>
    %6 = arith.select %2, %3, %5 : vector<32x128xf32>
    %c2_i32 = arith.constant 2 : i32
    %7 = arith.cmpi eq, %arg1, %c2_i32 : i32
    %cst_5 = arith.constant 0.000000e+00 : f32
    %8 = vector.broadcast %cst_5 : f32 to vector<32x128xf32>
    %c0_6 = arith.constant 0 : index
    %c0_7 = arith.constant 0 : index
    %c0_8 = arith.constant 0 : index
    %9 = vector.load %arg4[%c0_6, %c0_7, %c0_8] : memref<1x32x128xf32, #tpu.memory_space<vmem>>, vector<1x32x128xf32>
    %10 = vector.shape_cast %9 : vector<1x32x128xf32> to vector<32x128xf32>
    %11 = arith.select %7, %8, %10 : vector<32x128xf32>
    %12 = tpu.concatenate %6, %1, %11 in 1 : vector<32x128xf32>, vector<32x512xf32>, vector<32x128xf32> -> vector<32x768xf32>
    %cst_9 = arith.constant 0.000000e+00 : f32
    %13 = vector.broadcast %cst_9 : f32 to vector<32x768xf32>
    %14 = arith.cmpf oge, %12, %13 : vector<32x768xf32>
    %cst_10 = arith.constant 1.000000e-01 : f32
    %15 = vector.broadcast %cst_10 : f32 to vector<32x768xf32>
    %16 = arith.mulf %15, %12 : vector<32x768xf32>
    %17 = arith.select %14, %12, %16 : vector<32x768xi1>, vector<32x768xf32>
    %cst_11 = arith.constant 1.000000e+00 : f32
    %18 = vector.broadcast %cst_11 : f32 to vector<16x514xf32>
    %19 = vector.extract_strided_slice %17 {offsets = [0, 125], sizes = [32, 514], strides = [1, 1]} : vector<32x768xf32> to vector<32x514xf32>
    %20 = vector.extract_strided_slice %17 {offsets = [0, 127], sizes = [32, 514], strides = [1, 1]} : vector<32x768xf32> to vector<32x514xf32>
    %21 = vector.extract_strided_slice %17 {offsets = [0, 129], sizes = [32, 514], strides = [1, 1]} : vector<32x768xf32> to vector<32x514xf32>
    %22 = tpu.concatenate %19, %20, %21, %18 in 0 : vector<32x514xf32>, vector<32x514xf32>, vector<32x514xf32>, vector<16x514xf32> -> vector<112x514xf32>
    %c0_12 = arith.constant 0 : index
    %c0_13 = arith.constant 0 : index
    %23 = vector.load %arg5[%c0_12, %c0_13] : memref<32x112xf32, #tpu.memory_space<vmem>>, vector<32x112xf32>
    %cst_14 = arith.constant dense<0.000000e+00> : vector<32x514xf32>
    %24 = tpu.matmul %23, %22, %cst_14 {dimension_numbers = #tpu.dot_dimension_numbers<[1], [0], [0], [1], [0, 0, 1, 1], [], []>} : vector<32x112xf32>, vector<112x514xf32>, vector<32x514xf32> -> vector<32x514xf32>
    %25 = tpu.iota {dimensions = array<i32: 1>} : vector<1x514xi32>
    %c0_i32_15 = arith.constant 0 : i32
    %26 = arith.cmpi sgt, %arg1, %c0_i32_15 : i32
    %c1_i32 = arith.constant 1 : i32
    %27 = vector.broadcast %c1_i32 : i32 to vector<1x514xi32>
    %28 = arith.cmpi sge, %25, %27 : vector<1x514xi32>
    %29 = vector.broadcast %26 : i1 to vector<1x514xi1>
    %30 = arith.ori %29, %28 : vector<1x514xi1>
    %c2_i32_16 = arith.constant 2 : i32
    %31 = arith.cmpi slt, %arg1, %c2_i32_16 : i32
    %c513_i32 = arith.constant 513 : i32
    %32 = vector.broadcast %c513_i32 : i32 to vector<1x514xi32>
    %33 = arith.cmpi slt, %25, %32 : vector<1x514xi32>
    %34 = vector.broadcast %31 : i1 to vector<1x514xi1>
    %35 = arith.ori %34, %33 : vector<1x514xi1>
    %36 = arith.andi %30, %35 : vector<1x514xi1>
    %cst_17 = arith.constant 0.000000e+00 : f32
    %37 = vector.broadcast %cst_17 : f32 to vector<32x514xf32>
    %38 = arith.cmpf oge, %24, %37 : vector<32x514xf32>
    %cst_18 = arith.constant 1.000000e-01 : f32
    %39 = vector.broadcast %cst_18 : f32 to vector<32x514xf32>
    %40 = arith.mulf %39, %24 : vector<32x514xf32>
    %41 = arith.select %38, %24, %40 : vector<32x514xi1>, vector<32x514xf32>
    %cst_19 = arith.constant 0.000000e+00 : f32
    %42 = vector.shape_cast %36 : vector<1x514xi1> to vector<1x514xi1>
    %43 = vector.broadcast %42 : vector<1x514xi1> to vector<32x514xi1>
    %44 = vector.broadcast %cst_19 : f32 to vector<32x514xf32>
    %45 = arith.select %43, %41, %44 : vector<32x514xi1>, vector<32x514xf32>
    %cst_20 = arith.constant 1.000000e+00 : f32
    %46 = vector.broadcast %cst_20 : f32 to vector<16x512xf32>
    %47 = vector.extract_strided_slice %45 {offsets = [0, 0], sizes = [32, 512], strides = [1, 1]} : vector<32x514xf32> to vector<32x512xf32>
    %48 = vector.extract_strided_slice %45 {offsets = [0, 1], sizes = [32, 512], strides = [1, 1]} : vector<32x514xf32> to vector<32x512xf32>
    %49 = vector.extract_strided_slice %45 {offsets = [0, 2], sizes = [32, 512], strides = [1, 1]} : vector<32x514xf32> to vector<32x512xf32>
    %50 = tpu.concatenate %47, %48, %49, %46 in 0 : vector<32x512xf32>, vector<32x512xf32>, vector<32x512xf32>, vector<16x512xf32> -> vector<112x512xf32>
    %c0_21 = arith.constant 0 : index
    %c0_22 = arith.constant 0 : index
    %51 = vector.load %arg6[%c0_21, %c0_22] : memref<32x112xf32, #tpu.memory_space<vmem>>, vector<32x112xf32>
    %cst_23 = arith.constant dense<0.000000e+00> : vector<32x512xf32>
    %52 = tpu.matmul %51, %50, %cst_23 {dimension_numbers = #tpu.dot_dimension_numbers<[1], [0], [0], [1], [0, 0, 1, 1], [], []>} : vector<32x112xf32>, vector<112x512xf32>, vector<32x512xf32> -> vector<32x512xf32>
    %53 = arith.addf %1, %52 : vector<32x512xf32>
    %c0_24 = arith.constant 0 : index
    %c0_25 = arith.constant 0 : index
    %c0_26 = arith.constant 0 : index
    %54 = vector.load %arg7[%c0_24, %c0_25, %c0_26] : memref<1x32x512xf32, #tpu.memory_space<vmem>>, vector<1x32x512xf32>
    %55 = vector.shape_cast %54 : vector<1x32x512xf32> to vector<32x512xf32>
    %56 = vector.shape_cast %53 : vector<32x512xf32> to vector<1x32x512xf32>
    tpu.vector_store %arg7[%c0_24, %c0_25, %c0_26], %56 {strides = array<i32>} : memref<1x32x512xf32, #tpu.memory_space<vmem>>, vector<1x32x512xf32>,
    return
  }
  func.func @transform_0(%arg0: i32, %arg1: i32) -> (i32, i32, i32) {
    %c4_i32 = arith.constant 4 : i32
    %0 = arith.muli %arg1, %c4_i32 : i32
    %c1_i32 = arith.constant 1 : i32
    %1 = arith.subi %0, %c1_i32 : i32
    %c0_i32 = arith.constant 0 : i32
    %2 = arith.maxsi %1, %c0_i32 : i32
    %c0_i32_0 = arith.constant 0 : i32
    %c0_i32_1 = arith.constant 0 : i32
    return %arg0, %c0_i32_0, %2 : i32, i32, i32
  }
  func.func @transform_1(%arg0: i32, %arg1: i32) -> (i32, i32, i32) {
    %c0_i32 = arith.constant 0 : i32
    %c0_i32_0 = arith.constant 0 : i32
    return %arg0, %c0_i32, %arg1 : i32, i32, i32
  }
  func.func @transform_2(%arg0: i32, %arg1: i32) -> (i32, i32, i32) {
    %c1_i32 = arith.constant 1 : i32
    %0 = arith.addi %arg1, %c1_i32 : i32
    %c4_i32 = arith.constant 4 : i32
    %1 = arith.muli %0, %c4_i32 : i32
    %c11_i32 = arith.constant 11 : i32
    %2 = arith.minsi %1, %c11_i32 : i32
    %c0_i32 = arith.constant 0 : i32
    %c0_i32_0 = arith.constant 0 : i32
    return %arg0, %c0_i32, %2 : i32, i32, i32
  }
  func.func @transform_3(%arg0: i32, %arg1: i32) -> (i32, i32) {
    %c0_i32 = arith.constant 0 : i32
    %c0_i32_0 = arith.constant 0 : i32
    %c0_i32_1 = arith.constant 0 : i32
    return %c0_i32, %c0_i32_0 : i32, i32
  }
  func.func @transform_4(%arg0: i32, %arg1: i32) -> (i32, i32) {
    %c0_i32 = arith.constant 0 : i32
    %c0_i32_0 = arith.constant 0 : i32
    %c0_i32_1 = arith.constant 0 : i32
    return %c0_i32, %c0_i32_0 : i32, i32
  }
  func.func @transform_5(%arg0: i32, %arg1: i32) -> (i32, i32, i32) {
    %c0_i32 = arith.constant 0 : i32
    %c0_i32_0 = arith.constant 0 : i32
    return %arg0, %c0_i32, %arg1 : i32, i32, i32
  }
}

</mosaic_0001>

<llo_original>
// kernel: tpu_custom_call.1
$region0: #{tpu_custom_call.1}
  #allocation0 [shape = 'u32[]', space=smem, size = 0x4, offset = 0x4, fixed_abs, tag = 'smem constant byte address 0x4 - core index']
  #allocation1 [shape = 'u32[144,128]{1,0:T(1,128)}', space=vmem, size = 0x12000, scoped, tag = 'internal scratch']
  %s0 = inlined_call_operand.hbm [shape: f32[2,32,1536], index: 0, kind: input, shape index: {}]
  %s1 = inlined_call_operand.hbm [shape: f32[2,32,1536], index: 1, kind: input, shape index: {}]
  %s2 = inlined_call_operand.hbm [shape: f32[2,32,1536], index: 2, kind: input, shape index: {}]
  %s3 = inlined_call_operand.hbm [shape: f32[32,112], index: 3, kind: input, shape index: {}]
  %s4 = inlined_call_operand.hbm [shape: f32[32,112], index: 4, kind: input, shape index: {}]
  %s5 = inlined_call_operand.hbm [shape: f32[2,32,1536], index: 5, kind: output, shape index: {}]
  %s6 = sld [smem:[#allocation0]]
  $region73: #{tpu_custom_call.1} parent=0
    _
  %s8 = ssub.s32 1, %s6
  %s9 = scalar_select 0, %s8, %s6
  $region1: #{tpu_custom_call.1} parent=0
    #allocation2 [shape = 'u8[32768]{0}', space=vmem, size = 0x8000, scoped, tag = 'input window, operand 0']
    #allocation3 [shape = 's32[2]{0}', space=sflag, size = 0x8, scoped, tag = 'scoped memory for tpu_custom_call.1']
    #allocation4 [shape = 's32[2]{0}', space=sflag, size = 0x8, scoped, tag = 'scoped memory for tpu_custom_call.1']
    #allocation5 [shape = 'u8[131072]{0}', space=vmem, size = 0x20000, scoped, tag = 'input window, operand 1']
    #allocation6 [shape = 's32[2]{0}', space=sflag, size = 0x8, scoped, tag = 'scoped memory for tpu_custom_call.1']
    #allocation7 [shape = 'u8[32768]{0}', space=vmem, size = 0x8000, scoped, tag = 'input window, operand 2']
    #allocation8 [shape = 'u8[16384]{0}', space=vmem, size = 0x4000, scoped, tag = 'input window, operand 3, single buffered']
    #allocation9 [shape = 's32[1]{0}', space=sflag, size = 0x4, scoped, tag = 'scoped memory for tpu_custom_call.1']
    #allocation10 [shape = 'u8[16384]{0}', space=vmem, size = 0x4000, scoped, tag = 'input window, operand 4, single buffered']
    #allocation11 [shape = 'u8[131072]{0}', space=vmem, size = 0x20000, scoped, tag = 'output window, operand 0']
    %10 = vsyncpa [#allocation3], 0
    %s11 = scalar_lea.sflag [#allocation3], 1
    %12 = vsyncpa %s11, 0
    %13 = vsyncpa [#allocation6], 0
    %s14 = scalar_lea.sflag [#allocation6], 1
    %15 = vsyncpa %s14, 0
    %16 = vsyncpa [#allocation9], 0
    %17 = vsyncpa [#allocation4], 0
    %s18 = scalar_lea.sflag [#allocation4], 1
    %19 = vsyncpa %s18, 0
    loop: start=0, step=1, limit=8
    $region2: #{tpu_custom_call.1} parent=1 // loop_pre_header
      _
    $region3: #{tpu_custom_call.1} parent=1 // loop_header
      %s21 = sphi 0, %s25
      %p22 = scmp.ge.s32.totalorder %s21, 8
      %s28 = sphi 0, %s40
      %s29 = sphi 0, %s36
      %s30 = sphi 0, %s28
      %s31 = sphi 0, %s29
      %s32 = sphi 0, %s30
      %s33 = sphi 0, %s31
      %s53 = sphi 0, %s55
      %s56 = sphi 0, %s53
      %s57 = sphi 0, %s56
      %s73 = sphi 0, %s57
      %s81 = sphi 0, %s83
      %s84 = sphi 0, %s81
      %s85 = sphi 0, %s84
      %s101 = sphi 0, %s85
      %s117 = sphi 0, %s119
      %s120 = sphi 0, %s117
      %s121 = sphi 0, %s120
      %s137 = sphi 0, %s121
      %s141 = sphi 0, %s141
      %s143 = sphi 0, %s141
      %s144 = sphi 0, %s143
      %s158 = sphi 0, %s144
      %s162 = sphi 0, %s162
      %s164 = sphi 0, %s162
      %s165 = sphi 0, %s164
      %s179 = sphi 0, %s165
      %s187 = sphi 0, %s189
      %s190 = sphi 0, %s187
      %s191 = sphi 0, %s190
      %s207 = sphi 0, %s191
    $region4: #{tpu_custom_call.1} parent=1 // loop_header_branch
      %24 = sbr.rel (%p22) target = $region8
    $region5: #{tpu_custom_call.1} parent=1 // loop_body
      %s26 = ssub.s32 %s21, 1
      %s27 = ssub.s32 %s21, 2
      %s34 = sadd.s32 1, %s29
      %p35 = scmp.ge.s32.totalorder %s34, 3
      %s36 = scalar_select %p35, 0, %s34
      %s37 = sadd.s32 1, %s28
      %s38 = scalar_select %p35, %s37, %s28
      %p39 = scmp.ge.s32.totalorder %s38, 2
      %s40 = scalar_select %p39, 0, %s38
      %s41 = smul.u32 %s29, 4
      %s42 = ssub.s32 %s41, 1
      %p43 = scmp.gt.s32.totalorder %s42, 0
      %s44 = scalar_select %p43, %s42, 0
      %s45 = smul.u32 %s36, 4
      %s46 = ssub.s32 %s45, 1
      %p47 = scmp.gt.s32.totalorder %s46, 0
      %s48 = scalar_select %p47, %s46, 0
      %s49 = ssub.s32 %s28, %s40
      %s50 = ssub.s32 %s44, %s48
      %s51 = sor.u32 %s49, %s50
      %p52 = scmp.eq.s32.totalorder %s51, 0
      %s54 = sadd.s32 %s53, 1
      %s55 = scalar_select %p52, %s53, %s54
      %p58 = pneg %p52
      %p59 = scmp.eq.s32.totalorder %s21, 5
      %p60 = por %p58, %p59
      %p61 = scmp.ne.s32.totalorder %s53, %s56
      %p62 = scmp.eq.s32.totalorder %s21, 0
      %p63 = por %p61, %p62
      %p64 = scmp.ne.s32.totalorder %s53, %s56
      %p65 = scmp.eq.s32.totalorder %s26, 5
      %p66 = por %p64, %p65
      %p67 = scmp.ne.s32.totalorder %s56, %s57
      %p68 = scmp.eq.s32.totalorder %s26, 0
      %p69 = por %p67, %p68
      %p70 = scmp.ne.s32.totalorder %s56, %s57
      %p71 = scmp.eq.s32.totalorder %s27, 5
      %p72 = por %p70, %p71
      %p74 = scmp.ne.s32.totalorder %s57, %s73
      %p75 = scmp.eq.s32.totalorder %s27, 0
      %p76 = por %p74, %p75
      %s77 = ssub.s32 %s28, %s40
      %s78 = ssub.s32 %s29, %s36
      %s79 = sor.u32 %s77, %s78
      %p80 = scmp.eq.s32.totalorder %s79, 0
      %s82 = sadd.s32 %s81, 1
      %s83 = scalar_select %p80, %s81, %s82
      %p86 = pneg %p80
      %p87 = scmp.eq.s32.totalorder %s21, 5
      %p88 = por %p86, %p87
      %p89 = scmp.ne.s32.totalorder %s81, %s84
      %p90 = scmp.eq.s32.totalorder %s21, 0
      %p91 = por %p89, %p90
      %p92 = scmp.ne.s32.totalorder %s81, %s84
      %p93 = scmp.eq.s32.totalorder %s26, 5
      %p94 = por %p92, %p93
      %p95 = scmp.ne.s32.totalorder %s84, %s85
      %p96 = scmp.eq.s32.totalorder %s26, 0
      %p97 = por %p95, %p96
      %p98 = scmp.ne.s32.totalorder %s84, %s85
      %p99 = scmp.eq.s32.totalorder %s27, 5
      %p100 = por %p98, %p99
      %p102 = scmp.ne.s32.totalorder %s85, %s101
      %p103 = scmp.eq.s32.totalorder %s27, 0
      %p104 = por %p102, %p103
      %s105 = sadd.s32 %s29, 1
      %s106 = smul.u32 %s105, 4
      %p107 = scmp.lt.s32.totalorder %s106, 11
      %s108 = scalar_select %p107, %s106, 11
      %s109 = sadd.s32 %s36, 1
      %s110 = smul.u32 %s109, 4
      %p111 = scmp.lt.s32.totalorder %s110, 11
      %s112 = scalar_select %p111, %s110, 11
      %s113 = ssub.s32 %s28, %s40
      %s114 = ssub.s32 %s108, %s112
      %s115 = sor.u32 %s113, %s114
      %p116 = scmp.eq.s32.totalorder %s115, 0
      %s118 = sadd.s32 %s117, 1
      %s119 = scalar_select %p116, %s117, %s118
      %p122 = pneg %p116
      %p123 = scmp.eq.s32.totalorder %s21, 5
      %p124 = por %p122, %p123
      %p125 = scmp.ne.s32.totalorder %s117, %s120
      %p126 = scmp.eq.s32.totalorder %s21, 0
      %p127 = por %p125, %p126
      %p128 = scmp.ne.s32.totalorder %s117, %s120
      %p129 = scmp.eq.s32.totalorder %s26, 5
      %p130 = por %p128, %p129
      %p131 = scmp.ne.s32.totalorder %s120, %s121
      %p132 = scmp.eq.s32.totalorder %s26, 0
      %p133 = por %p131, %p132
      %p134 = scmp.ne.s32.totalorder %s120, %s121
      %p135 = scmp.eq.s32.totalorder %s27, 5
      %p136 = por %p134, %p135
      %p138 = scmp.ne.s32.totalorder %s121, %s137
      %p139 = scmp.eq.s32.totalorder %s27, 0
      %p140 = por %p138, %p139
      %s142 = sadd.s32 %s141, 1
      %p145 = scmp.eq.s32.totalorder %s21, 5
      %p146 = scmp.ne.s32.totalorder %s141, %s143
      %p147 = scmp.eq.s32.totalorder %s21, 0
      %p148 = por %p146, %p147
      %p149 = scmp.ne.s32.totalorder %s141, %s143
      %p150 = scmp.eq.s32.totalorder %s26, 5
      %p151 = por %p149, %p150
      %p152 = scmp.ne.s32.totalorder %s143, %s144
      %p153 = scmp.eq.s32.totalorder %s26, 0
      %p154 = por %p152, %p153
      %p155 = scmp.ne.s32.totalorder %s143, %s144
      %p156 = scmp.eq.s32.totalorder %s27, 5
      %p157 = por %p155, %p156
      %p159 = scmp.ne.s32.totalorder %s144, %s158
      %p160 = scmp.eq.s32.totalorder %s27, 0
      %p161 = por %p159, %p160
      %s163 = sadd.s32 %s162, 1
      %p166 = scmp.eq.s32.totalorder %s21, 5
      %p167 = scmp.ne.s32.totalorder %s162, %s164
      %p168 = scmp.eq.s32.totalorder %s21, 0
      %p169 = por %p167, %p168
      %p170 = scmp.ne.s32.totalorder %s162, %s164
      %p171 = scmp.eq.s32.totalorder %s26, 5
      %p172 = por %p170, %p171
      %p173 = scmp.ne.s32.totalorder %s164, %s165
      %p174 = scmp.eq.s32.totalorder %s26, 0
      %p175 = por %p173, %p174
      %p176 = scmp.ne.s32.totalorder %s164, %s165
      %p177 = scmp.eq.s32.totalorder %s27, 5
      %p178 = por %p176, %p177
      %p180 = scmp.ne.s32.totalorder %s165, %s179
      %p181 = scmp.eq.s32.totalorder %s27, 0
      %p182 = por %p180, %p181
      %s183 = ssub.s32 %s28, %s40
      %s184 = ssub.s32 %s29, %s36
      %s185 = sor.u32 %s183, %s184
      %p186 = scmp.eq.s32.totalorder %s185, 0
      %s188 = sadd.s32 %s187, 1
      %s189 = scalar_select %p186, %s187, %s188
      %p192 = pneg %p186
      %p193 = scmp.eq.s32.totalorder %s21, 5
      %p194 = por %p192, %p193
      %p195 = scmp.ne.s32.totalorder %s187, %s190
      %p196 = scmp.eq.s32.totalorder %s21, 0
      %p197 = por %p195, %p196
      %p198 = scmp.ne.s32.totalorder %s187, %s190
      %p199 = scmp.eq.s32.totalorder %s26, 5
      %p200 = por %p198, %p199
      %p201 = scmp.ne.s32.totalorder %s190, %s191
      %p202 = scmp.eq.s32.totalorder %s26, 0
      %p203 = por %p201, %p202
      %p204 = scmp.ne.s32.totalorder %s190, %s191
      %p205 = scmp.eq.s32.totalorder %s27, 5
      %p206 = por %p204, %p205
      %p208 = scmp.ne.s32.totalorder %s191, %s207
      %p209 = scmp.eq.s32.totalorder %s27, 0
      %p210 = por %p208, %p209
      %p211 = scmp.le.s32.totalorder 1, %s21
      %p212 = scmp.lt.s32.totalorder %s21, 7
      %p213 = pnand %p211, %p212
      %p214 = pneg %p213
      // Predicated region
      $region9: #{tpu_custom_call.1} parent=5 // pred_check
        _
      $region10: #{tpu_custom_call.1} parent=5 // pred_check_branch
        %216 = sbr.rel (%p213) target = $region12
      $region11: #{tpu_custom_call.1} parent=5 // pred_region
        %s217 = ssub.s32 %s21, 1
        // Predicated region
        $region13: #{tpu_custom_call.1} parent=11 // pred_check
          %p218 = pneg %p154
        $region14: #{tpu_custom_call.1} parent=11 // pred_check_branch
          %220 = sbr.rel (%p218) target = $region16
        $region15: #{tpu_custom_call.1} parent=11 // pred_region
          %s222 = ssub.s32 512, 512
          %223 = vsyncadd [#allocation9], %s222
          %s224 = sshll.u32 [#allocation8], 4
          %s225 = int_to_ptr.vmem [resolvable:$true] %s224
          %230 = dma.hbm_to_vmem [thread:$0]  %s3, 512, %s225, [#allocation9], 128, 128, 8
        $region16: #{tpu_custom_call.1} parent=11 // pred_fallthru
          _
        // Predicated region
        $region17: #{tpu_custom_call.1} parent=11 // pred_check
          %p231 = pneg %p175
        $region18: #{tpu_custom_call.1} parent=11 // pred_check_branch
          %233 = sbr.rel (%p231) target = $region20
        $region19: #{tpu_custom_call.1} parent=11 // pred_region
          %s235 = ssub.s32 512, 512
          %236 = vsyncadd [#allocation9], %s235
          %s237 = sshll.u32 [#allocation10], 4
          %s238 = int_to_ptr.vmem [resolvable:$true] %s237
          %243 = dma.hbm_to_vmem [thread:$0]  %s4, 512, %s238, [#allocation9], 128, 128, 8
        $region20: #{tpu_custom_call.1} parent=11 // pred_fallthru
          _
      $region12: #{tpu_custom_call.1} parent=5 // pred_fallthru
        _
      %p244 = scmp.lt.s32.totalorder %s21, 6
      // Predicated region
      $region21: #{tpu_custom_call.1} parent=5 // pred_check
        %p245 = pneg %p244
      $region22: #{tpu_custom_call.1} parent=5 // pred_check_branch
        %247 = sbr.rel (%p245) target = $region24
      $region23: #{tpu_custom_call.1} parent=5 // pred_region
        // Predicated region
        $region25: #{tpu_custom_call.1} parent=23 // pred_check
          %p248 = pneg %p63
        $region26: #{tpu_custom_call.1} parent=23 // pred_check_branch
          %250 = sbr.rel (%p248) target = $region28
        $region27: #{tpu_custom_call.1} parent=23 // pred_region
          %s251 = sand.u32 %s53, 1
          %s252 = scalar_lea.sflag [#allocation3], %s251
          %s253 = sand.u32 %s53, 1
          %s254 = smul.addr %s253, 32
          %s255 = scalar_lea.vmem [#allocation2], %s254
          %s256 = smul.u32 %s29, 4
          %s257 = ssub.s32 %s256, 1
          %p258 = scmp.gt.s32.totalorder %s257, 0
          %s259 = scalar_select %p258, %s257, 0
          %s261 = ssub.s32 512, 512
          %262 = vsyncadd %s252, %s261
          %s263 = smul.addr %s28, 48
          %s264 = sadd.s32 %s259, %s263
          %s265 = smul.addr %s264, 128
          %s266 = scalar_lea.hbm %s0, %s265
          %s267 = sshll.u32 %s255, 4
          %s268 = int_to_ptr.vmem [resolvable:$true] %s267
          %273 = dma.hbm_to_vmem [thread:$0]  %s266, 512, %s268, %s252, 1536, 128, 8
        $region28: #{tpu_custom_call.1} parent=23 // pred_fallthru
          _
        // Predicated region
        $region29: #{tpu_custom_call.1} parent=23 // pred_check
          %p274 = pneg %p91
        $region30: #{tpu_custom_call.1} parent=23 // pred_check_branch
          %276 = sbr.rel (%p274) target = $region32
        $region31: #{tpu_custom_call.1} parent=23 // pred_region
          %s277 = sand.u32 %s21, 1
          %s278 = scalar_lea.sflag [#allocation6], %s277
          %s279 = sand.u32 %s81, 1
          %s280 = smul.addr %s279, 128
          %s281 = scalar_lea.vmem [#allocation5], %s280
          %s282 = smul.u32 4, %s29
          %s284 = ssub.s32 2048, 2048
          %285 = vsyncadd %s278, %s284
          %s286 = smul.addr %s28, 48
          %s287 = sadd.s32 %s282, %s286
          %s288 = smul.addr %s287, 128
          %s289 = scalar_lea.hbm %s1, %s288
          %s290 = sshll.u32 %s281, 4
          %s291 = int_to_ptr.vmem [resolvable:$true] %s290
          %296 = dma.hbm_to_vmem [thread:$0]  %s289, 2048, %s291, %s278, 1536, 512, 32
        $region32: #{tpu_custom_call.1} parent=23 // pred_fallthru
          _
        // Predicated region
        $region33: #{tpu_custom_call.1} parent=23 // pred_check
          %p297 = pneg %p127
        $region34: #{tpu_custom_call.1} parent=23 // pred_check_branch
          %299 = sbr.rel (%p297) target = $region36
        $region35: #{tpu_custom_call.1} parent=23 // pred_region
          %s300 = sand.u32 %s21, 1
          %s301 = scalar_lea.sflag [#allocation6], %s300
          %s302 = sand.u32 %s117, 1
          %s303 = smul.addr %s302, 32
          %s304 = scalar_lea.vmem [#allocation7], %s303
          %s305 = sadd.s32 %s29, 1
          %s306 = smul.u32 %s305, 4
          %p307 = scmp.lt.s32.totalorder %s306, 11
          %s308 = scalar_select %p307, %s306, 11
          %s310 = ssub.s32 512, 512
          %311 = vsyncadd %s301, %s310
          %s312 = smul.addr %s28, 48
          %s313 = sadd.s32 %s308, %s312
          %s314 = smul.addr %s313, 128
          %s315 = scalar_lea.hbm %s2, %s314
          %s316 = sshll.u32 %s304, 4
          %s317 = int_to_ptr.vmem [resolvable:$true] %s316
          %322 = dma.hbm_to_vmem [thread:$0]  %s315, 512, %s317, %s301, 1536, 128, 8
        $region36: #{tpu_custom_call.1} parent=23 // pred_fallthru
          _
      $region24: #{tpu_custom_call.1} parent=5 // pred_fallthru
        _
      %p323 = scmp.le.s32.totalorder 1, %s21
      %p324 = scmp.lt.s32.totalorder %s21, 7
      %p325 = pnand %p323, %p324
      %p326 = pneg %p325
      // Predicated region
      $region37: #{tpu_custom_call.1} parent=5 // pred_check
        _
      $region38: #{tpu_custom_call.1} parent=5 // pred_check_branch
        %328 = sbr.rel (%p325) target = $region40
      $region39: #{tpu_custom_call.1} parent=5 // pred_region
        %s329 = ssub.s32 %s21, 1
        %s330 = sand.u32 %s56, 1
        %s331 = scalar_lea.sflag [#allocation3], %s330
        %s332 = sand.u32 %s56, 1
        %s333 = smul.addr %s332, 32
        %s334 = scalar_lea.vmem [#allocation2], %s333
        // Predicated region
        $region41: #{tpu_custom_call.1} parent=39 // pred_check
          %p335 = pneg %p69
        $region42: #{tpu_custom_call.1} parent=39 // pred_check_branch
          %337 = sbr.rel (%p335) target = $region44
        $region43: #{tpu_custom_call.1} parent=39 // pred_region
          %338 = dma.done %s331, 512
        $region44: #{tpu_custom_call.1} parent=39 // pred_fallthru
          _
        %s339 = sand.u32 %s26, 1
        %s340 = scalar_lea.sflag [#allocation6], %s339
        %s341 = sand.u32 %s84, 1
        %s342 = smul.addr %s341, 128
        %s343 = scalar_lea.vmem [#allocation5], %s342
        // Predicated region
        $region45: #{tpu_custom_call.1} parent=39 // pred_check
          %p344 = pneg %p97
        $region46: #{tpu_custom_call.1} parent=39 // pred_check_branch
          %346 = sbr.rel (%p344) target = $region48
        $region47: #{tpu_custom_call.1} parent=39 // pred_region
          %347 = dma.done %s340, 2048
        $region48: #{tpu_custom_call.1} parent=39 // pred_fallthru
          _
        %s348 = sand.u32 %s26, 1
        %s349 = scalar_lea.sflag [#allocation6], %s348
        %s350 = sand.u32 %s120, 1
        %s351 = smul.addr %s350, 32
        %s352 = scalar_lea.vmem [#allocation7], %s351
        // Predicated region
        $region49: #{tpu_custom_call.1} parent=39 // pred_check
          %p353 = pneg %p133
        $region50: #{tpu_custom_call.1} parent=39 // pred_check_branch
          %355 = sbr.rel (%p353) target = $region52
        $region51: #{tpu_custom_call.1} parent=39 // pred_region
          %356 = dma.done %s349, 512
        $region52: #{tpu_custom_call.1} parent=39 // pred_fallthru
          _
        // Predicated region
        $region53: #{tpu_custom_call.1} parent=39 // pred_check
          %p357 = pneg %p154
        $region54: #{tpu_custom_call.1} parent=39 // pred_check_branch
          %359 = sbr.rel (%p357) target = $region56
        $region55: #{tpu_custom_call.1} parent=39 // pred_region
          %360 = dma.done [#allocation9], 512
        $region56: #{tpu_custom_call.1} parent=39 // pred_fallthru
          _
        // Predicated region
        $region57: #{tpu_custom_call.1} parent=39 // pred_check
          %p361 = pneg %p175
        $region58: #{tpu_custom_call.1} parent=39 // pred_check_branch
          %363 = sbr.rel (%p361) target = $region60
        $region59: #{tpu_custom_call.1} parent=39 // pred_region
          %364 = dma.done [#allocation9], 512
        $region60: #{tpu_custom_call.1} parent=39 // pred_fallthru
          _
        %s365 = sand.u32 %s56, 1
        %s366 = scalar_lea.sflag [#allocation3], %s365
        %s367 = sand.u32 %s56, 1
        %s368 = smul.addr %s367, 32
        %s369 = scalar_lea.vmem [#allocation2], %s368
        %p370 = pneg %p69
        %p371 = pneg %p66
        %s372 = sand.u32 %s26, 1
        %s373 = scalar_lea.sflag [#allocation6], %s372
        %s374 = sand.u32 %s84, 1
        %s375 = smul.addr %s374, 128
        %s376 = scalar_lea.vmem [#allocation5], %s375
        %p377 = pneg %p97
        %p378 = pneg %p94
        %s379 = sand.u32 %s26, 1
        %s380 = scalar_lea.sflag [#allocation6], %s379
        %s381 = sand.u32 %s120, 1
        %s382 = smul.addr %s381, 32
        %s383 = scalar_lea.vmem [#allocation7], %s382
        %p384 = pneg %p133
        %p385 = pneg %p130
        %p386 = pneg %p154
        %p387 = pneg %p151
        %p388 = pneg %p175
        %p389 = pneg %p172
        %p390 = pneg %p203
        %p391 = pneg %p200
        %s392 = sand.u32 %s190, 1
        %s393 = scalar_lea.sflag [#allocation4], %s392
        %s394 = sand.u32 %s190, 1
        %s395 = smul.addr %s394, 128
        %s396 = scalar_lea.vmem [#allocation11], %s395
        %s397 = smul.u32 %s31, 4
        %s398 = ssub.s32 %s397, 1
        %p399 = scmp.gt.s32.totalorder %s398, 0
        %s400 = scalar_select %p399, %s398, 0
        %s401 = smul.u32 4, %s31
        %s402 = sadd.s32 %s31, 1
        %s403 = smul.u32 %s402, 4
        %p404 = scmp.lt.s32.totalorder %s403, 11
        %s405 = scalar_select %p404, %s403, 11
        %s406 = smul.u32 4, %s31
        %v407 = vld [vmem:[%s343] sm:$0xff]
        %v408 = vld [vmem:[%s343 + $0x8] sm:$0xff]
        %v409 = vld [vmem:[%s343 + $0x10] sm:$0xff]
        %v410 = vld [vmem:[%s343 + $0x18] sm:$0xff]
        %v411 = vld [vmem:[%s343 + $0x20] sm:$0xff]
        %v412 = vld [vmem:[%s343 + $0x28] sm:$0xff]
        %v413 = vld [vmem:[%s343 + $0x30] sm:$0xff]
        %v414 = vld [vmem:[%s343 + $0x38] sm:$0xff]
        %v415 = vld [vmem:[%s343 + $0x40] sm:$0xff]
        %v416 = vld [vmem:[%s343 + $0x48] sm:$0xff]
        %v417 = vld [vmem:[%s343 + $0x50] sm:$0xff]
        %v418 = vld [vmem:[%s343 + $0x58] sm:$0xff]
        %v419 = vld [vmem:[%s343 + $0x60] sm:$0xff]
        %v420 = vld [vmem:[%s343 + $0x68] sm:$0xff]
        %v421 = vld [vmem:[%s343 + $0x70] sm:$0xff]
        %v422 = vld [vmem:[%s343 + $0x78] sm:$0xff]
        %p423 = scmp.eq.s32.totalorder %s31, 0
        %v424 = vld [vmem:[%s334] sm:$0xff]
        %v425 = vld [vmem:[%s334 + $0x8] sm:$0xff]
        %v426 = vld [vmem:[%s334 + $0x10] sm:$0xff]
        %v427 = vld [vmem:[%s334 + $0x18] sm:$0xff]
        %s428 = scalar_select %p423, 1, 0
        %v429 = vstv %s428
        %vm430 = vcmp.eq.s32.totalorder %v429, 1
        %v431 = vsel %vm430, 0.0, %v424
        %v432 = vsel %vm430, 0.0, %v425
        %v433 = vsel %vm430, 0.0, %v426
        %v434 = vsel %vm430, 0.0, %v427
        %p435 = scmp.eq.s32.totalorder %s31, 2
        %v436 = vld [vmem:[%s352] sm:$0xff]
        %v437 = vld [vmem:[%s352 + $0x8] sm:$0xff]
        %v438 = vld [vmem:[%s352 + $0x10] sm:$0xff]
        %v439 = vld [vmem:[%s352 + $0x18] sm:$0xff]
        %s440 = scalar_select %p435, 1, 0
        %v441 = vstv %s440
        %vm442 = vcmp.eq.s32.totalorder %v441, 1
        %v443 = vsel %vm442, 0.0, %v436
        %v444 = vsel %vm442, 0.0, %v437
        %v445 = vsel %vm442, 0.0, %v438
        %v446 = vsel %vm442, 0.0, %v439
        %vm447 = vcmp.ge.f32.partialorder %v431, 0.0
        %vm448 = vcmp.ge.f32.partialorder %v407, 0.0
        %vm449 = vcmp.ge.f32.partialorder %v408, 0.0
        %vm450 = vcmp.ge.f32.partialorder %v409, 0.0
        %vm451 = vcmp.ge.f32.partialorder %v410, 0.0
        %vm452 = vcmp.ge.f32.partialorder %v443, 0.0
        %vm453 = vcmp.ge.f32.partialorder %v432, 0.0
        %vm454 = vcmp.ge.f32.partialorder %v411, 0.0
        %vm455 = vcmp.ge.f32.partialorder %v412, 0.0
        %vm456 = vcmp.ge.f32.partialorder %v413, 0.0
        %vm457 = vcmp.ge.f32.partialorder %v414, 0.0
        %vm458 = vcmp.ge.f32.partialorder %v444, 0.0
        %vm459 = vcmp.ge.f32.partialorder %v433, 0.0
        %vm460 = vcmp.ge.f32.partialorder %v415, 0.0
        %vm461 = vcmp.ge.f32.partialorder %v416, 0.0
        %vm462 = vcmp.ge.f32.partialorder %v417, 0.0
        %vm463 = vcmp.ge.f32.partialorder %v418, 0.0
        %vm464 = vcmp.ge.f32.partialorder %v445, 0.0
        %vm465 = vcmp.ge.f32.partialorder %v434, 0.0
        %vm466 = vcmp.ge.f32.partialorder %v419, 0.0
        %vm467 = vcmp.ge.f32.partialorder %v420, 0.0
        %vm468 = vcmp.ge.f32.partialorder %v421, 0.0
        %vm469 = vcmp.ge.f32.partialorder %v422, 0.0
        %vm470 = vcmp.ge.f32.partialorder %v446, 0.0
        %v471 = vmul.f32 %v431, 0.1
        %v472 = vmul.f32 %v407, 0.1
        %v473 = vmul.f32 %v408, 0.1
        %v474 = vmul.f32 %v409, 0.1
        %v475 = vmul.f32 %v410, 0.1
        %v476 = vmul.f32 %v443, 0.1
        %v477 = vmul.f32 %v432, 0.1
        %v478 = vmul.f32 %v411, 0.1
        %v479 = vmul.f32 %v412, 0.1
        %v480 = vmul.f32 %v413, 0.1
        %v481 = vmul.f32 %v414, 0.1
        %v482 = vmul.f32 %v444, 0.1
        %v483 = vmul.f32 %v433, 0.1
        %v484 = vmul.f32 %v415, 0.1
        %v485 = vmul.f32 %v416, 0.1
        %v486 = vmul.f32 %v417, 0.1
        %v487 = vmul.f32 %v418, 0.1
        %v488 = vmul.f32 %v445, 0.1
        %v489 = vmul.f32 %v434, 0.1
        %v490 = vmul.f32 %v419, 0.1
        %v491 = vmul.f32 %v420, 0.1
        %v492 = vmul.f32 %v421, 0.1
        %v493 = vmul.f32 %v422, 0.1
        %v494 = vmul.f32 %v446, 0.1
        %v495 = vsel %vm447, %v431, %v471
        %v496 = vsel %vm448, %v407, %v472
        %v497 = vsel %vm449, %v408, %v473
        %v498 = vsel %vm450, %v409, %v474
        %v499 = vsel %vm451, %v410, %v475
        %v500 = vsel %vm452, %v443, %v476
        %v501 = vsel %vm453, %v432, %v477
        %v502 = vsel %vm454, %v411, %v478
        %v503 = vsel %vm455, %v412, %v479
        %v504 = vsel %vm456, %v413, %v480
        %v505 = vsel %vm457, %v414, %v481
        %v506 = vsel %vm458, %v444, %v482
        %v507 = vsel %vm459, %v433, %v483
        %v508 = vsel %vm460, %v415, %v484
        %v509 = vsel %vm461, %v416, %v485
        %v510 = vsel %vm462, %v417, %v486
        %v511 = vsel %vm463, %v418, %v487
        %v512 = vsel %vm464, %v445, %v488
        %v513 = vsel %vm465, %v434, %v489
        %v514 = vsel %vm466, %v419, %v490
        %v515 = vsel %vm467, %v420, %v491
        %v516 = vsel %vm468, %v421, %v492
        %v517 = vsel %vm469, %v422, %v493
        %v518 = vsel %vm470, %v446, %v494
        %543 = vrot.lane.b32.xlu0 %v495, 126
        %v544 = vpop.permute.xlu0 %543
        %545 = vrot.lane.b32.xlu0 %v496, 126
        %v546 = vpop.permute.xlu0 %545
        %547 = vrot.lane.b32.xlu0 %v497, 126
        %v548 = vpop.permute.xlu0 %547
        %549 = vrot.lane.b32.xlu0 %v498, 126
        %v550 = vpop.permute.xlu0 %549
        %551 = vrot.lane.b32.xlu0 %v499, 126
        %v552 = vpop.permute.xlu0 %551
        %553 = vrot.lane.b32.xlu0 %v500, 126
        %v554 = vpop.permute.xlu0 %553
        %555 = vrot.lane.b32.xlu0 %v501, 126
        %v556 = vpop.permute.xlu0 %555
        %557 = vrot.lane.b32.xlu0 %v502, 126
        %v558 = vpop.permute.xlu0 %557
        %559 = vrot.lane.b32.xlu0 %v503, 126
        %v560 = vpop.permute.xlu0 %559
        %561 = vrot.lane.b32.xlu0 %v504, 126
        %v562 = vpop.permute.xlu0 %561
        %563 = vrot.lane.b32.xlu0 %v505, 126
        %v564 = vpop.permute.xlu0 %563
        %565 = vrot.lane.b32.xlu0 %v506, 126
        %v566 = vpop.permute.xlu0 %565
        %567 = vrot.lane.b32.xlu0 %v507, 126
        %v568 = vpop.permute.xlu0 %567
        %569 = vrot.lane.b32.xlu0 %v508, 126
        %v570 = vpop.permute.xlu0 %569
        %571 = vrot.lane.b32.xlu0 %v509, 126
        %v572 = vpop.permute.xlu0 %571
        %573 = vrot.lane.b32.xlu0 %v510, 126
        %v574 = vpop.permute.xlu0 %573
        %575 = vrot.lane.b32.xlu0 %v511, 126
        %v576 = vpop.permute.xlu0 %575
        %577 = vrot.lane.b32.xlu0 %v512, 126
        %v578 = vpop.permute.xlu0 %577
        %579 = vrot.lane.b32.xlu0 %v513, 126
        %v580 = vpop.permute.xlu0 %579
        %581 = vrot.lane.b32.xlu0 %v514, 126
        %v582 = vpop.permute.xlu0 %581
        %583 = vrot.lane.b32.xlu0 %v515, 126
        %v584 = vpop.permute.xlu0 %583
        %585 = vrot.lane.b32.xlu0 %v516, 126
        %v586 = vpop.permute.xlu0 %585
        %587 = vrot.lane.b32.xlu0 %v517, 126
        %v588 = vpop.permute.xlu0 %587
        %589 = vrot.lane.b32.xlu0 %v518, 126
        %v590 = vpop.permute.xlu0 %589
        %vm591 = vcmask 1031168
        %v592 = vsel %vm591, %v544, %v546
        %v593 = vsel %vm591, %v546, %v548
        %v594 = vsel %vm591, %v548, %v550
        %v595 = vsel %vm591, %v550, %v552
        %v596 = vsel %vm591, %v552, %v554
        %v597 = vsel %vm591, %v556, %v558
        %v598 = vsel %vm591, %v558, %v560
        %v599 = vsel %vm591, %v560, %v562
        %v600 = vsel %vm591, %v562, %v564
        %v601 = vsel %vm591, %v564, %v566
        %v602 = vsel %vm591, %v568, %v570
        %v603 = vsel %vm591, %v570, %v572
        %v604 = vsel %vm591, %v572, %v574
        %v605 = vsel %vm591, %v574, %v576
        %v606 = vsel %vm591, %v576, %v578
        %v607 = vsel %vm591, %v580, %v582
        %v608 = vsel %vm591, %v582, %v584
        %v609 = vsel %vm591, %v584, %v586
        %v610 = vsel %vm591, %v586, %v588
        %v611 = vsel %vm591, %v588, %v590
        %612 = vrot.lane.b32.xlu0 %v496, 124
        %v613 = vpop.permute.xlu0 %612
        %614 = vrot.lane.b32.xlu0 %v497, 124
        %v615 = vpop.permute.xlu0 %614
        %616 = vrot.lane.b32.xlu0 %v498, 124
        %v617 = vpop.permute.xlu0 %616
        %618 = vrot.lane.b32.xlu0 %v499, 124
        %v619 = vpop.permute.xlu0 %618
        %620 = vrot.lane.b32.xlu0 %v500, 124
        %v621 = vpop.permute.xlu0 %620
        %622 = vrot.lane.b32.xlu0 %v502, 124
        %v623 = vpop.permute.xlu0 %622
        %624 = vrot.lane.b32.xlu0 %v503, 124
        %v625 = vpop.permute.xlu0 %624
        %626 = vrot.lane.b32.xlu0 %v504, 124
        %v627 = vpop.permute.xlu0 %626
        %628 = vrot.lane.b32.xlu0 %v505, 124
        %v629 = vpop.permute.xlu0 %628
        %630 = vrot.lane.b32.xlu0 %v506, 124
        %v631 = vpop.permute.xlu0 %630
        %632 = vrot.lane.b32.xlu0 %v508, 124
        %v633 = vpop.permute.xlu0 %632
        %634 = vrot.lane.b32.xlu0 %v509, 124
        %v635 = vpop.permute.xlu0 %634
        %636 = vrot.lane.b32.xlu0 %v510, 124
        %v637 = vpop.permute.xlu0 %636
        %638 = vrot.lane.b32.xlu0 %v511, 124
        %v639 = vpop.permute.xlu0 %638
        %640 = vrot.lane.b32.xlu0 %v512, 124
        %v641 = vpop.permute.xlu0 %640
        %642 = vrot.lane.b32.xlu0 %v514, 124
        %v643 = vpop.permute.xlu0 %642
        %644 = vrot.lane.b32.xlu0 %v515, 124
        %v645 = vpop.permute.xlu0 %644
        %646 = vrot.lane.b32.xlu0 %v516, 124
        %v647 = vpop.permute.xlu0 %646
        %648 = vrot.lane.b32.xlu0 %v517, 124
        %v649 = vpop.permute.xlu0 %648
        %650 = vrot.lane.b32.xlu0 %v518, 124
        %v651 = vpop.permute.xlu0 %650
        %vm652 = vcmask 1014784
        %v653 = vsel %vm652, %v613, %v615
        %v654 = vsel %vm652, %v615, %v617
        %v655 = vsel %vm652, %v617, %v619
        %v656 = vsel %vm652, %v619, %v621
        %v657 = vsel %vm652, %v623, %v625
        %v658 = vsel %vm652, %v625, %v627
        %v659 = vsel %vm652, %v627, %v629
        %v660 = vsel %vm652, %v629, %v631
        %v661 = vsel %vm652, %v633, %v635
        %v662 = vsel %vm652, %v635, %v637
        %v663 = vsel %vm652, %v637, %v639
        %v664 = vsel %vm652, %v639, %v641
        %v665 = vsel %vm652, %v643, %v645
        %v666 = vsel %vm652, %v645, %v647
        %v667 = vsel %vm652, %v647, %v649
        %v668 = vsel %vm652, %v649, %v651
        %v669 = vld [vmem:[#allocation8] sm:$0xff]
        %v670 = vld [vmem:[#allocation8 + $0x8] sm:$0xff]
        %v671 = vld [vmem:[#allocation8 + $0x10] sm:$0xff]
        %v672 = vld [vmem:[#allocation8 + $0x18] sm:$0xff]
        %674 = vrot.lane.b32.xlu0 %v495, 3
        %v675 = vpop.permute.xlu0 %674
        %676 = vrot.lane.b32.xlu0 %v496, 3
        %v677 = vpop.permute.xlu0 %676
        %678 = vrot.lane.b32.xlu0 %v497, 3
        %v679 = vpop.permute.xlu0 %678
        %680 = vrot.lane.b32.xlu0 %v498, 3
        %v681 = vpop.permute.xlu0 %680
        %682 = vrot.lane.b32.xlu0 %v499, 3
        %v683 = vpop.permute.xlu0 %682
        %684 = vrot.lane.b32.xlu0 %v501, 3
        %v685 = vpop.permute.xlu0 %684
        %686 = vrot.lane.b32.xlu0 %v502, 3
        %v687 = vpop.permute.xlu0 %686
        %688 = vrot.lane.b32.xlu0 %v503, 3
        %v689 = vpop.permute.xlu0 %688
        %690 = vrot.lane.b32.xlu0 %v504, 3
        %v691 = vpop.permute.xlu0 %690
        %692 = vrot.lane.b32.xlu0 %v505, 3
        %v693 = vpop.permute.xlu0 %692
        %694 = vrot.lane.b32.xlu0 %v507, 3
        %v695 = vpop.permute.xlu0 %694
        %696 = vrot.lane.b32.xlu0 %v508, 3
        %v697 = vpop.permute.xlu0 %696
        %698 = vrot.lane.b32.xlu0 %v509, 3
        %v699 = vpop.permute.xlu0 %698
        %700 = vrot.lane.b32.xlu0 %v510, 3
        %v701 = vpop.permute.xlu0 %700
        %702 = vrot.lane.b32.xlu0 %v511, 3
        %v703 = vpop.permute.xlu0 %702
        %704 = vrot.lane.b32.xlu0 %v513, 3
        %v705 = vpop.permute.xlu0 %704
        %706 = vrot.lane.b32.xlu0 %v514, 3
        %v707 = vpop.permute.xlu0 %706
        %708 = vrot.lane.b32.xlu0 %v515, 3
        %v709 = vpop.permute.xlu0 %708
        %710 = vrot.lane.b32.xlu0 %v516, 3
        %v711 = vpop.permute.xlu0 %710
        %712 = vrot.lane.b32.xlu0 %v517, 3
        %v713 = vpop.permute.xlu0 %712
        %714 = vrot.lane.b32.xlu0 %v592, 3
        %v715 = vpop.permute.xlu0 %714
        %716 = vrot.lane.b32.xlu0 %v593, 3
        %v717 = vpop.permute.xlu0 %716
        %718 = vrot.lane.b32.xlu0 %v594, 3
        %v719 = vpop.permute.xlu0 %718
        %720 = vrot.lane.b32.xlu0 %v595, 3
        %v721 = vpop.permute.xlu0 %720
        %722 = vrot.lane.b32.xlu0 %v596, 3
        %v723 = vpop.permute.xlu0 %722
        %724 = vrot.lane.b32.xlu0 %v597, 3
        %v725 = vpop.permute.xlu0 %724
        %726 = vrot.lane.b32.xlu0 %v598, 3
        %v727 = vpop.permute.xlu0 %726
        %728 = vrot.lane.b32.xlu0 %v599, 3
        %v729 = vpop.permute.xlu0 %728
        %730 = vrot.lane.b32.xlu0 %v600, 3
        %v731 = vpop.permute.xlu0 %730
        %732 = vrot.lane.b32.xlu0 %v601, 3
        %v733 = vpop.permute.xlu0 %732
        %734 = vrot.lane.b32.xlu0 %v602, 3
        %v735 = vpop.permute.xlu0 %734
        %736 = vrot.lane.b32.xlu0 %v603, 3
        %v737 = vpop.permute.xlu0 %736
        %738 = vrot.lane.b32.xlu0 %v604, 3
        %v739 = vpop.permute.xlu0 %738
        %740 = vrot.lane.b32.xlu0 %v605, 3
        %v741 = vpop.permute.xlu0 %740
        %742 = vrot.lane.b32.xlu0 %v606, 3
        %v743 = vpop.permute.xlu0 %742
        %744 = vrot.lane.b32.xlu0 %v607, 3
        %v745 = vpop.permute.xlu0 %744
        %746 = vrot.lane.b32.xlu0 %v608, 3
        %v747 = vpop.permute.xlu0 %746
        %748 = vrot.lane.b32.xlu0 %v609, 3
        %v749 = vpop.permute.xlu0 %748
        %750 = vrot.lane.b32.xlu0 %v610, 3
        %v751 = vpop.permute.xlu0 %750
        %752 = vrot.lane.b32.xlu0 %v611, 3
        %v753 = vpop.permute.xlu0 %752
        %754 = vrot.lane.b32.xlu0 %v613, 3
        %v755 = vpop.permute.xlu0 %754
        %756 = vrot.lane.b32.xlu0 %v653, 3
        %v757 = vpop.permute.xlu0 %756
        %758 = vrot.lane.b32.xlu0 %v654, 3
        %v759 = vpop.permute.xlu0 %758
        %760 = vrot.lane.b32.xlu0 %v655, 3
        %v761 = vpop.permute.xlu0 %760
        %762 = vrot.lane.b32.xlu0 %v656, 3
        %v763 = vpop.permute.xlu0 %762
        %764 = vrot.lane.b32.xlu0 %v623, 3
        %v765 = vpop.permute.xlu0 %764
        %766 = vrot.lane.b32.xlu0 %v657, 3
        %v767 = vpop.permute.xlu0 %766
        %768 = vrot.lane.b32.xlu0 %v658, 3
        %v769 = vpop.permute.xlu0 %768
        %770 = vrot.lane.b32.xlu0 %v659, 3
        %v771 = vpop.permute.xlu0 %770
        %772 = vrot.lane.b32.xlu0 %v660, 3
        %v773 = vpop.permute.xlu0 %772
        %774 = vrot.lane.b32.xlu0 %v633, 3
        %v775 = vpop.permute.xlu0 %774
        %776 = vrot.lane.b32.xlu0 %v661, 3
        %v777 = vpop.permute.xlu0 %776
        %778 = vrot.lane.b32.xlu0 %v662, 3
        %v779 = vpop.permute.xlu0 %778
        %780 = vrot.lane.b32.xlu0 %v663, 3
        %v781 = vpop.permute.xlu0 %780
        %782 = vrot.lane.b32.xlu0 %v664, 3
        %v783 = vpop.permute.xlu0 %782
        %784 = vrot.lane.b32.xlu0 %v643, 3
        %v785 = vpop.permute.xlu0 %784
        %786 = vrot.lane.b32.xlu0 %v665, 3
        %v787 = vpop.permute.xlu0 %786
        %788 = vrot.lane.b32.xlu0 %v666, 3
        %v789 = vpop.permute.xlu0 %788
        %790 = vrot.lane.b32.xlu0 %v667, 3
        %v791 = vpop.permute.xlu0 %790
        %792 = vrot.lane.b32.xlu0 %v668, 3
        %v793 = vpop.permute.xlu0 %792
        %794 = vrot.lane.b32.xlu0 1.0, 3
        %v795 = vpop.permute.xlu0 %794
        %vm796 = vcmask 23552
        %v797 = vsel %vm796, %v675, %v677
        %v798 = vsel %vm796, %v677, %v679
        %v799 = vsel %vm796, %v679, %v681
        %v800 = vsel %vm796, %v681, %v683
        %v801 = vsel %vm796, %v685, %v687
        %v802 = vsel %vm796, %v687, %v689
        %v803 = vsel %vm796, %v689, %v691
        %v804 = vsel %vm796, %v691, %v693
        %v805 = vsel %vm796, %v695, %v697
        %v806 = vsel %vm796, %v697, %v699
        %v807 = vsel %vm796, %v699, %v701
        %v808 = vsel %vm796, %v701, %v703
        %v809 = vsel %vm796, %v705, %v707
        %v810 = vsel %vm796, %v707, %v709
        %v811 = vsel %vm796, %v709, %v711
        %v812 = vsel %vm796, %v711, %v713
        %v813 = vsel %vm796, %v715, %v717
        %v814 = vsel %vm796, %v717, %v719
        %v815 = vsel %vm796, %v719, %v721
        %v816 = vsel %vm796, %v721, %v723
        %v817 = vsel %vm796, %v725, %v727
        %v818 = vsel %vm796, %v727, %v729
        %v819 = vsel %vm796, %v729, %v731
        %v820 = vsel %vm796, %v731, %v733
        %v821 = vsel %vm796, %v735, %v737
        %v822 = vsel %vm796, %v737, %v739
        %v823 = vsel %vm796, %v739, %v741
        %v824 = vsel %vm796, %v741, %v743
        %v825 = vsel %vm796, %v745, %v747
        %v826 = vsel %vm796, %v747, %v749
        %v827 = vsel %vm796, %v749, %v751
        %v828 = vsel %vm796, %v751, %v753
        %v829 = vsel %vm796, %v755, %v757
        %v830 = vsel %vm796, %v757, %v759
        %v831 = vsel %vm796, %v759, %v761
        %v832 = vsel %vm796, %v761, %v763
        %v833 = vsel %vm796, %v765, %v767
        %v834 = vsel %vm796, %v767, %v769
        %v835 = vsel %vm796, %v769, %v771
        %v836 = vsel %vm796, %v771, %v773
        %v837 = vsel %vm796, %v775, %v777
        %v838 = vsel %vm796, %v777, %v779
        %v839 = vsel %vm796, %v779, %v781
        %v840 = vsel %vm796, %v781, %v783
        %v841 = vsel %vm796, %v785, %v787
        %v842 = vsel %vm796, %v787, %v789
        %v843 = vsel %vm796, %v789, %v791
        %v844 = vsel %vm796, %v791, %v793
        %vm906 = vcmask 916480
        %v908 = vsel %vm906, %v669, 0
        %v911 = vsel %vm906, %v670, 0
        %v914 = vsel %vm906, %v671, 0
        %v917 = vsel %vm906, %v672, 0
        %919 = vmatprep.subr.mxu0 %v798
        %920 = vmatpush1.msra.mxu0 %v797
        %921 = vmatprep.subr.mxu0 %v802
        %922 = vmatpush1.msra.mxu0 %v801
        %923 = vmatprep.subr.mxu0 %v806
        %924 = vmatpush1.msra.mxu0 %v805
        %925 = vmatprep.subr.mxu0 %v810
        %926 = vmatpush1.msra.mxu0 %v809
        %927 = vmatprep.subr.mxu0 %v814
        %928 = vmatpush1.msra.mxu0 %v813
        %929 = vmatprep.subr.mxu0 %v818
        %930 = vmatpush1.msra.mxu0 %v817
        %931 = vmatprep.subr.mxu0 %v822
        %932 = vmatpush1.msra.mxu0 %v821
        %933 = vmatprep.subr.mxu0 %v826
        %934 = vmatpush1.msra.mxu0 %v825
        %935 = vmatprep.subr.mxu0 %v830
        %936 = vmatpush1.msra.mxu0 %v829
        %937 = vmatprep.subr.mxu0 %v834
        %938 = vmatpush1.msra.mxu0 %v833
        %939 = vmatprep.subr.mxu0 %v838
        %940 = vmatpush1.msra.mxu0 %v837
        %941 = vmatprep.subr.mxu0 %v842
        %942 = vmatpush1.msra.mxu0 %v841
        %943 = vmatprep.subr.mxu0 %v795
        %944 = vmatpush1.msra.mxu0 %v795
        %945 = vmatprep.subr.mxu0 %v795
        %946 = vmatpush1.msra.mxu0 %v795
        %947 = vmatprep.subr.mxu0 0.0
        %948 = vmatpush1.msra.mxu0 0.0
        %949 = vmatprep.subr.mxu0 0.0
        %950 = vmatpush1.msra.mxu0 0.0
        %951 = vmatprep.subr.mxu0 0.0
        %952 = vmatpush1.msra.mxu0 0.0
        %953 = vmatprep.subr.mxu0 0.0
        %954 = vmatpush1.msra.mxu0 0.0
        %955 = vmatprep.subr.mxu0 0.0
        %956 = vmatpush1.msra.mxu0 0.0
        %957 = vmatprep.subr.mxu0 0.0
        %958 = vmatpush1.msra.mxu0 0.0
        %959 = vmatprep.subr.mxu0 0.0
        %960 = vmatpush1.msra.mxu0 0.0
        %961 = vmatprep.subr.mxu0 0.0
        %962 = vmatpush1.msra.mxu0 0.0
        %963 = vmatprep.subr.mxu0 0.0
        %964 = vmatpush1.msra.mxu0 0.0
        %965 = vmatprep.subr.mxu0 0.0
        %966 = vmatpush1.msra.mxu0 0.0
        %967 = vmatprep.subr.mxu0 0.0
        %968 = vmatpush1.msra.mxu0 0.0
        %969 = vmatprep.subr.mxu0 0.0
        %970 = vmatpush1.msra.mxu0 0.0
        %971 = vmatprep.subr.mxu0 0.0
        %972 = vmatpush1.msra.mxu0 0.0
        %973 = vmatprep.subr.mxu0 0.0
        %974 = vmatpush1.msra.mxu0 0.0
        %975 = vmatprep.subr.mxu0 0.0
        %976 = vmatpush1.msra.mxu0 0.0
        %977 = vmatprep.subr.mxu0 0.0
        %978 = vmatpush1.msra.mxu0 0.0
        %979 = vmatprep.subr.mxu0 0.0
        %980 = vmatpush1.msra.mxu0 0.0
        %981 = vmatprep.subr.mxu0 0.0
        %982 = vmatpush1.msra.mxu0 0.0
        %983 = vmatprep.mubr.f32.mxu0 0.0
        %984 = vmatmul.mubr.f32.gmra.mrb[0].mxu0 %v908
        %v985 = vpop.f32.mrb[0].mxu0
        %v986 = vadd.f32 0.0, %v985
        %v987 = vpop.f32.mrb[0].mxu0
        %v988 = vadd.f32 0.0, %v987
        %989 = vmatprep.mubr.f32.mxu0 0.0
        %990 = vmatmul.mubr.f32.gmra.mrb[0].mxu0 %v911
        %v991 = vpop.f32.mrb[0].mxu0
        %v992 = vadd.f32 0.0, %v991
        %v993 = vpop.f32.mrb[0].mxu0
        %v994 = vadd.f32 0.0, %v993
        %995 = vmatprep.mubr.f32.mxu0 0.0
        %996 = vmatmul.mubr.f32.gmra.mrb[0].mxu0 %v914
        %v997 = vpop.f32.mrb[0].mxu0
        %v998 = vadd.f32 0.0, %v997
        %v999 = vpop.f32.mrb[0].mxu0
        %v1000 = vadd.f32 0.0, %v999
        %1001 = vmatprep.mubr.f32.mxu0 0.0
        %1002 = vmatmul.mubr.f32.gmra.mrb[0].mxu0 %v917
        %v1003 = vpop.f32.mrb[0].mxu0
        %v1004 = vadd.f32 0.0, %v1003
        %v1005 = vpop.f32.mrb[0].mxu0
        %v1006 = vadd.f32 0.0, %v1005
        %1007 = vdwg.mxu0
        %1008 = vmatprep.subr.mxu0 %v800
        %1009 = vmatpush1.msra.mxu0 %v799
        %1010 = vmatprep.subr.mxu0 %v804
        %1011 = vmatpush1.msra.mxu0 %v803
        %1012 = vmatprep.subr.mxu0 %v808
        %1013 = vmatpush1.msra.mxu0 %v807
        %1014 = vmatprep.subr.mxu0 %v812
        %1015 = vmatpush1.msra.mxu0 %v811
        %1016 = vmatprep.subr.mxu0 %v816
        %1017 = vmatpush1.msra.mxu0 %v815
        %1018 = vmatprep.subr.mxu0 %v820
        %1019 = vmatpush1.msra.mxu0 %v819
        %1020 = vmatprep.subr.mxu0 %v824
        %1021 = vmatpush1.msra.mxu0 %v823
        %1022 = vmatprep.subr.mxu0 %v828
        %1023 = vmatpush1.msra.mxu0 %v827
        %1024 = vmatprep.subr.mxu0 %v832
        %1025 = vmatpush1.msra.mxu0 %v831
        %1026 = vmatprep.subr.mxu0 %v836
        %1027 = vmatpush1.msra.mxu0 %v835
        %1028 = vmatprep.subr.mxu0 %v840
        %1029 = vmatpush1.msra.mxu0 %v839
        %1030 = vmatprep.subr.mxu0 %v844
        %1031 = vmatpush1.msra.mxu0 %v843
        %1032 = vmatprep.subr.mxu0 %v795
        %1033 = vmatpush1.msra.mxu0 %v795
        %1034 = vmatprep.subr.mxu0 %v795
        %1035 = vmatpush1.msra.mxu0 %v795
        %1036 = vmatprep.subr.mxu0 0.0
        %1037 = vmatpush1.msra.mxu0 0.0
        %1038 = vmatprep.subr.mxu0 0.0
        %1039 = vmatpush1.msra.mxu0 0.0
        %1040 = vmatprep.subr.mxu0 0.0
        %1041 = vmatpush1.msra.mxu0 0.0
        %1042 = vmatprep.subr.mxu0 0.0
        %1043 = vmatpush1.msra.mxu0 0.0
        %1044 = vmatprep.subr.mxu0 0.0
        %1045 = vmatpush1.msra.mxu0 0.0
        %1046 = vmatprep.subr.mxu0 0.0
        %1047 = vmatpush1.msra.mxu0 0.0
        %1048 = vmatprep.subr.mxu0 0.0
        %1049 = vmatpush1.msra.mxu0 0.0
        %1050 = vmatprep.subr.mxu0 0.0
        %1051 = vmatpush1.msra.mxu0 0.0
        %1052 = vmatprep.subr.mxu0 0.0
        %1053 = vmatpush1.msra.mxu0 0.0
        %1054 = vmatprep.subr.mxu0 0.0
        %1055 = vmatpush1.msra.mxu0 0.0
        %1056 = vmatprep.subr.mxu0 0.0
        %1057 = vmatpush1.msra.mxu0 0.0
        %1058 = vmatprep.subr.mxu0 0.0
        %1059 = vmatpush1.msra.mxu0 0.0
        %1060 = vmatprep.subr.mxu0 0.0
        %1061 = vmatpush1.msra.mxu0 0.0
        %1062 = vmatprep.subr.mxu0 0.0
        %1063 = vmatpush1.msra.mxu0 0.0
        %1064 = vmatprep.subr.mxu0 0.0
        %1065 = vmatpush1.msra.mxu0 0.0
        %1066 = vmatprep.subr.mxu0 0.0
        %1067 = vmatpush1.msra.mxu0 0.0
        %1068 = vmatprep.subr.mxu0 0.0
        %1069 = vmatpush1.msra.mxu0 0.0
        %1070 = vmatprep.subr.mxu0 0.0
        %1071 = vmatpush1.msra.mxu0 0.0
        %1072 = vmatprep.mubr.f32.mxu0 0.0
        %1073 = vmatmul.mubr.f32.gmra.mrb[0].mxu0 %v908
        %v1074 = vpop.f32.mrb[0].mxu0
        %v1075 = vadd.f32 0.0, %v1074
        %v1076 = vpop.f32.mrb[0].mxu0
        %v1077 = vadd.f32 0.0, %v1076
        %1078 = vmatprep.mubr.f32.mxu0 0.0
        %1079 = vmatmul.mubr.f32.gmra.mrb[0].mxu0 %v911
        %v1080 = vpop.f32.mrb[0].mxu0
        %v1081 = vadd.f32 0.0, %v1080
        %v1082 = vpop.f32.mrb[0].mxu0
        %v1083 = vadd.f32 0.0, %v1082
        %1084 = vmatprep.mubr.f32.mxu0 0.0
        %1085 = vmatmul.mubr.f32.gmra.mrb[0].mxu0 %v914
        %v1086 = vpop.f32.mrb[0].mxu0
        %v1087 = vadd.f32 0.0, %v1086
        %v1088 = vpop.f32.mrb[0].mxu0
        %v1089 = vadd.f32 0.0, %v1088
        %1090 = vmatprep.mubr.f32.mxu0 0.0
        %1091 = vmatmul.mubr.f32.gmra.mrb[0].mxu0 %v917
        %v1092 = vpop.f32.mrb[0].mxu0
        %v1093 = vadd.f32 0.0, %v1092
        %v1094 = vpop.f32.mrb[0].mxu0
        %v1095 = vadd.f32 0.0, %v1094
        %1096 = vdwg.mxu0
        %1097 = vmatprep.subr.mxu0 0.0
        %1098 = vmatpush1.msra.mxu0 %v683
        %1099 = vmatprep.subr.mxu0 0.0
        %1100 = vmatpush1.msra.mxu0 %v693
        %1101 = vmatprep.subr.mxu0 0.0
        %1102 = vmatpush1.msra.mxu0 %v703
        %1103 = vmatprep.subr.mxu0 0.0
        %1104 = vmatpush1.msra.mxu0 %v713
        %1105 = vmatprep.subr.mxu0 0.0
        %1106 = vmatpush1.msra.mxu0 %v723
        %1107 = vmatprep.subr.mxu0 0.0
        %1108 = vmatpush1.msra.mxu0 %v733
        %1109 = vmatprep.subr.mxu0 0.0
        %1110 = vmatpush1.msra.mxu0 %v743
        %1111 = vmatprep.subr.mxu0 0.0
        %1112 = vmatpush1.msra.mxu0 %v753
        %1113 = vmatprep.subr.mxu0 0.0
        %1114 = vmatpush1.msra.mxu0 %v763
        %1115 = vmatprep.subr.mxu0 0.0
        %1116 = vmatpush1.msra.mxu0 %v773
        %1117 = vmatprep.subr.mxu0 0.0
        %1118 = vmatpush1.msra.mxu0 %v783
        %1119 = vmatprep.subr.mxu0 0.0
        %1120 = vmatpush1.msra.mxu0 %v793
        %1121 = vmatprep.subr.mxu0 0.0
        %1122 = vmatpush1.msra.mxu0 %v795
        %1123 = vmatprep.subr.mxu0 0.0
        %1124 = vmatpush1.msra.mxu0 %v795
        %1125 = vmatprep.subr.mxu0 0.0
        %1126 = vmatpush1.msra.mxu0 0.0
        %1127 = vmatprep.subr.mxu0 0.0
        %1128 = vmatpush1.msra.mxu0 0.0
        %1129 = vmatprep.subr.mxu0 0.0
        %1130 = vmatpush1.msra.mxu0 0.0
        %1131 = vmatprep.subr.mxu0 0.0
        %1132 = vmatpush1.msra.mxu0 0.0
        %1133 = vmatprep.subr.mxu0 0.0
        %1134 = vmatpush1.msra.mxu0 0.0
        %1135 = vmatprep.subr.mxu0 0.0
        %1136 = vmatpush1.msra.mxu0 0.0
        %1137 = vmatprep.subr.mxu0 0.0
        %1138 = vmatpush1.msra.mxu0 0.0
        %1139 = vmatprep.subr.mxu0 0.0
        %1140 = vmatpush1.msra.mxu0 0.0
        %1141 = vmatprep.subr.mxu0 0.0
        %1142 = vmatpush1.msra.mxu0 0.0
        %1143 = vmatprep.subr.mxu0 0.0
        %1144 = vmatpush1.msra.mxu0 0.0
        %1145 = vmatprep.subr.mxu0 0.0
        %1146 = vmatpush1.msra.mxu0 0.0
        %1147 = vmatprep.subr.mxu0 0.0
        %1148 = vmatpush1.msra.mxu0 0.0
        %1149 = vmatprep.subr.mxu0 0.0
        %1150 = vmatpush1.msra.mxu0 0.0
        %1151 = vmatprep.subr.mxu0 0.0
        %1152 = vmatpush1.msra.mxu0 0.0
        %1153 = vmatprep.subr.mxu0 0.0
        %1154 = vmatpush1.msra.mxu0 0.0
        %1155 = vmatprep.subr.mxu0 0.0
        %1156 = vmatpush1.msra.mxu0 0.0
        %1157 = vmatprep.subr.mxu0 0.0
        %1158 = vmatpush1.msra.mxu0 0.0
        %1159 = vmatprep.subr.mxu0 0.0
        %1160 = vmatpush1.msra.mxu0 0.0
        %1161 = vmatprep.mubr.f32.mxu0 0.0
        %1162 = vmatmul.mubr.f32.gmra.mrb[0].mxu0 %v908
        %v1163 = vpop.f32.mrb[0].mxu0
        %v1164 = vadd.f32 0.0, %v1163
        %v1165 = vpop.f32.mrb[0].mxu0
        %1166 = vmatprep.mubr.f32.mxu0 0.0
        %1167 = vmatmul.mubr.f32.gmra.mrb[0].mxu0 %v911
        %v1168 = vpop.f32.mrb[0].mxu0
        %v1169 = vadd.f32 0.0, %v1168
        %v1170 = vpop.f32.mrb[0].mxu0
        %1171 = vmatprep.mubr.f32.mxu0 0.0
        %1172 = vmatmul.mubr.f32.gmra.mrb[0].mxu0 %v914
        %v1173 = vpop.f32.mrb[0].mxu0
        %v1174 = vadd.f32 0.0, %v1173
        %v1175 = vpop.f32.mrb[0].mxu0
        %1176 = vmatprep.mubr.f32.mxu0 0.0
        %1177 = vmatmul.mubr.f32.gmra.mrb[0].mxu0 %v917
        %v1178 = vpop.f32.mrb[0].mxu0
        %v1179 = vadd.f32 0.0, %v1178
        %v1180 = vpop.f32.mrb[0].mxu0
        %1181 = vdwg.mxu0
        %v1182 = vlaneseq
        %v1183 = vand.u32 %v1182, 127
        %v1184 = vadd.s32 %v1183, 128
        %v1185 = vadd.s32 %v1183, 256
        %v1186 = vadd.s32 %v1183, 384
        %v1187 = vadd.s32 %v1183, 512
        %p1188 = scmp.gt.s32.totalorder %s31, 0
        %vm1189 = vcmp.ge.s32.totalorder %v1183, 1
        %vm1190 = vcmp.ge.s32.totalorder %v1184, 1
        %vm1191 = vcmp.ge.s32.totalorder %v1185, 1
        %vm1192 = vcmp.ge.s32.totalorder %v1186, 1
        %vm1193 = vcmp.ge.s32.totalorder %v1187, 1
        %s1194 = scalar_select %p1188, 1, 0
        %v1195 = vstv %s1194
        %vm1196 = vcmp.eq.s32.totalorder %v1195, 1
        %vm1197 = vmor %vm1196, %vm1189
        %vm1198 = vmor %vm1196, %vm1190
        %vm1199 = vmor %vm1196, %vm1191
        %vm1200 = vmor %vm1196, %vm1192
        %vm1201 = vmor %vm1196, %vm1193
        %p1202 = scmp.lt.s32.totalorder %s31, 2
        %vm1203 = vcmp.lt.s32.totalorder %v1183, 513
        %vm1204 = vcmp.lt.s32.totalorder %v1184, 513
        %vm1205 = vcmp.lt.s32.totalorder %v1185, 513
        %vm1206 = vcmp.lt.s32.totalorder %v1186, 513
        %vm1207 = vcmp.lt.s32.totalorder %v1187, 513
        %s1208 = scalar_select %p1202, 1, 0
        %v1209 = vstv %s1208
        %vm1210 = vcmp.eq.s32.totalorder %v1209, 1
        %vm1211 = vmor %vm1210, %vm1203
        %vm1212 = vmor %vm1210, %vm1204
        %vm1213 = vmor %vm1210, %vm1205
        %vm1214 = vmor %vm1210, %vm1206
        %vm1215 = vmor %vm1210, %vm1207
        %vm1216 = vmand %vm1197, %vm1211
        %vm1217 = vmand %vm1198, %vm1212
        %vm1218 = vmand %vm1199, %vm1213
        %vm1219 = vmand %vm1200, %vm1214
        %vm1220 = vmand %vm1201, %vm1215
        %vm1221 = vcmp.ge.f32.partialorder %v986, 0.0
        %vm1222 = vcmp.ge.f32.partialorder %v988, 0.0
        %vm1223 = vcmp.ge.f32.partialorder %v1075, 0.0
        %vm1224 = vcmp.ge.f32.partialorder %v1077, 0.0
        %vm1225 = vcmp.ge.f32.partialorder %v1164, 0.0
        %vm1226 = vcmp.ge.f32.partialorder %v992, 0.0
        %vm1227 = vcmp.ge.f32.partialorder %v994, 0.0
        %vm1228 = vcmp.ge.f32.partialorder %v1081, 0.0
        %vm1229 = vcmp.ge.f32.partialorder %v1083, 0.0
        %vm1230 = vcmp.ge.f32.partialorder %v1169, 0.0
        %vm1231 = vcmp.ge.f32.partialorder %v998, 0.0
        %vm1232 = vcmp.ge.f32.partialorder %v1000, 0.0
        %vm1233 = vcmp.ge.f32.partialorder %v1087, 0.0
        %vm1234 = vcmp.ge.f32.partialorder %v1089, 0.0
        %vm1235 = vcmp.ge.f32.partialorder %v1174, 0.0
        %vm1236 = vcmp.ge.f32.partialorder %v1004, 0.0
        %vm1237 = vcmp.ge.f32.partialorder %v1006, 0.0
        %vm1238 = vcmp.ge.f32.partialorder %v1093, 0.0
        %vm1239 = vcmp.ge.f32.partialorder %v1095, 0.0
        %vm1240 = vcmp.ge.f32.partialorder %v1179, 0.0
        %v1241 = vmul.f32 %v986, 0.1
        %v1242 = vmul.f32 %v988, 0.1
        %v1243 = vmul.f32 %v1075, 0.1
        %v1244 = vmul.f32 %v1077, 0.1
        %v1245 = vmul.f32 %v1164, 0.1
        %v1246 = vmul.f32 %v992, 0.1
        %v1247 = vmul.f32 %v994, 0.1
        %v1248 = vmul.f32 %v1081, 0.1
        %v1249 = vmul.f32 %v1083, 0.1
        %v1250 = vmul.f32 %v1169, 0.1
        %v1251 = vmul.f32 %v998, 0.1
        %v1252 = vmul.f32 %v1000, 0.1
        %v1253 = vmul.f32 %v1087, 0.1
        %v1254 = vmul.f32 %v1089, 0.1
        %v1255 = vmul.f32 %v1174, 0.1
        %v1256 = vmul.f32 %v1004, 0.1
        %v1257 = vmul.f32 %v1006, 0.1
        %v1258 = vmul.f32 %v1093, 0.1
        %v1259 = vmul.f32 %v1095, 0.1
        %v1260 = vmul.f32 %v1179, 0.1
        %v1261 = vsel %vm1221, %v986, %v1241
        %v1262 = vsel %vm1222, %v988, %v1242
        %v1263 = vsel %vm1223, %v1075, %v1243
        %v1264 = vsel %vm1224, %v1077, %v1244
        %v1265 = vsel %vm1225, %v1164, %v1245
        %v1266 = vsel %vm1226, %v992, %v1246
        %v1267 = vsel %vm1227, %v994, %v1247
        %v1268 = vsel %vm1228, %v1081, %v1248
        %v1269 = vsel %vm1229, %v1083, %v1249
        %v1270 = vsel %vm1230, %v1169, %v1250
        %v1271 = vsel %vm1231, %v998, %v1251
        %v1272 = vsel %vm1232, %v1000, %v1252
        %v1273 = vsel %vm1233, %v1087, %v1253
        %v1274 = vsel %vm1234, %v1089, %v1254
        %v1275 = vsel %vm1235, %v1174, %v1255
        %v1276 = vsel %vm1236, %v1004, %v1256
        %v1277 = vsel %vm1237, %v1006, %v1257
        %v1278 = vsel %vm1238, %v1093, %v1258
        %v1279 = vsel %vm1239, %v1095, %v1259
        %v1280 = vsel %vm1240, %v1179, %v1260
        %v1281 = vsel %vm1216, 1, 0
        %v1282 = vsel %vm1217, 1, 0
        %v1283 = vsel %vm1218, 1, 0
        %v1284 = vsel %vm1219, 1, 0
        %v1285 = vsel %vm1220, 1, 0
        %vm1286 = vcmp.eq.s32.totalorder %v1281, 1
        %vm1287 = vcmp.eq.s32.totalorder %v1282, 1
        %vm1288 = vcmp.eq.s32.totalorder %v1283, 1
        %vm1289 = vcmp.eq.s32.totalorder %v1284, 1
        %vm1290 = vcmp.eq.s32.totalorder %v1285, 1
        %v1291 = vsel %vm1286, %v1261, 0.0
        %v1292 = vsel %vm1287, %v1262, 0.0
        %v1293 = vsel %vm1288, %v1263, 0.0
        %v1294 = vsel %vm1289, %v1264, 0.0
        %v1295 = vsel %vm1290, %v1265, 0.0
        %v1296 = vsel %vm1286, %v1266, 0.0
        %v1297 = vsel %vm1287, %v1267, 0.0
        %v1298 = vsel %vm1288, %v1268, 0.0
        %v1299 = vsel %vm1289, %v1269, 0.0
        %v1300 = vsel %vm1290, %v1270, 0.0
        %v1301 = vsel %vm1286, %v1271, 0.0
        %v1302 = vsel %vm1287, %v1272, 0.0
        %v1303 = vsel %vm1288, %v1273, 0.0
        %v1304 = vsel %vm1289, %v1274, 0.0
        %v1305 = vsel %vm1290, %v1275, 0.0
        %v1306 = vsel %vm1286, %v1276, 0.0
        %v1307 = vsel %vm1287, %v1277, 0.0
        %v1308 = vsel %vm1288, %v1278, 0.0
        %v1309 = vsel %vm1289, %v1279, 0.0
        %v1310 = vsel %vm1290, %v1280, 0.0
        %1331 = vrot.lane.b32.xlu0 %v1291, 127
        %v1332 = vpop.permute.xlu0 %1331
        %1333 = vrot.lane.b32.xlu0 %v1292, 127
        %v1334 = vpop.permute.xlu0 %1333
        %1335 = vrot.lane.b32.xlu0 %v1293, 127
        %v1336 = vpop.permute.xlu0 %1335
        %1337 = vrot.lane.b32.xlu0 %v1294, 127
        %v1338 = vpop.permute.xlu0 %1337
        %1339 = vrot.lane.b32.xlu0 %v1295, 127
        %v1340 = vpop.permute.xlu0 %1339
        %1341 = vrot.lane.b32.xlu0 %v1296, 127
        %v1342 = vpop.permute.xlu0 %1341
        %1343 = vrot.lane.b32.xlu0 %v1297, 127
        %v1344 = vpop.permute.xlu0 %1343
        %1345 = vrot.lane.b32.xlu0 %v1298, 127
        %v1346 = vpop.permute.xlu0 %1345
        %1347 = vrot.lane.b32.xlu0 %v1299, 127
        %v1348 = vpop.permute.xlu0 %1347
        %1349 = vrot.lane.b32.xlu0 %v1300, 127
        %v1350 = vpop.permute.xlu0 %1349
        %1351 = vrot.lane.b32.xlu0 %v1301, 127
        %v1352 = vpop.permute.xlu0 %1351
        %1353 = vrot.lane.b32.xlu0 %v1302, 127
        %v1354 = vpop.permute.xlu0 %1353
        %1355 = vrot.lane.b32.xlu0 %v1303, 127
        %v1356 = vpop.permute.xlu0 %1355
        %1357 = vrot.lane.b32.xlu0 %v1304, 127
        %v1358 = vpop.permute.xlu0 %1357
        %1359 = vrot.lane.b32.xlu0 %v1305, 127
        %v1360 = vpop.permute.xlu0 %1359
        %1361 = vrot.lane.b32.xlu0 %v1306, 127
        %v1362 = vpop.permute.xlu0 %1361
        %1363 = vrot.lane.b32.xlu0 %v1307, 127
        %v1364 = vpop.permute.xlu0 %1363
        %1365 = vrot.lane.b32.xlu0 %v1308, 127
        %v1366 = vpop.permute.xlu0 %1365
        %1367 = vrot.lane.b32.xlu0 %v1309, 127
        %v1368 = vpop.permute.xlu0 %1367
        %1369 = vrot.lane.b32.xlu0 %v1310, 127
        %v1370 = vpop.permute.xlu0 %1369
        %vm1371 = vcmask 1039360
        %v1372 = vsel %vm1371, %v1332, %v1334
        %v1373 = vsel %vm1371, %v1334, %v1336
        %v1374 = vsel %vm1371, %v1336, %v1338
        %v1375 = vsel %vm1371, %v1338, %v1340
        %v1376 = vsel %vm1371, %v1342, %v1344
        %v1377 = vsel %vm1371, %v1344, %v1346
        %v1378 = vsel %vm1371, %v1346, %v1348
        %v1379 = vsel %vm1371, %v1348, %v1350
        %v1380 = vsel %vm1371, %v1352, %v1354
        %v1381 = vsel %vm1371, %v1354, %v1356
        %v1382 = vsel %vm1371, %v1356, %v1358
        %v1383 = vsel %vm1371, %v1358, %v1360
        %v1384 = vsel %vm1371, %v1362, %v1364
        %v1385 = vsel %vm1371, %v1364, %v1366
        %v1386 = vsel %vm1371, %v1366, %v1368
        %v1387 = vsel %vm1371, %v1368, %v1370
        %1404 = vrot.lane.b32.xlu0 %v1291, 126
        %v1405 = vpop.permute.xlu0 %1404
        %1406 = vrot.lane.b32.xlu0 %v1292, 126
        %v1407 = vpop.permute.xlu0 %1406
        %1408 = vrot.lane.b32.xlu0 %v1293, 126
        %v1409 = vpop.permute.xlu0 %1408
        %1410 = vrot.lane.b32.xlu0 %v1294, 126
        %v1411 = vpop.permute.xlu0 %1410
        %1412 = vrot.lane.b32.xlu0 %v1295, 126
        %v1413 = vpop.permute.xlu0 %1412
        %1414 = vrot.lane.b32.xlu0 %v1296, 126
        %v1415 = vpop.permute.xlu0 %1414
        %1416 = vrot.lane.b32.xlu0 %v1297, 126
        %v1417 = vpop.permute.xlu0 %1416
        %1418 = vrot.lane.b32.xlu0 %v1298, 126
        %v1419 = vpop.permute.xlu0 %1418
        %1420 = vrot.lane.b32.xlu0 %v1299, 126
        %v1421 = vpop.permute.xlu0 %1420
        %1422 = vrot.lane.b32.xlu0 %v1300, 126
        %v1423 = vpop.permute.xlu0 %1422
        %1424 = vrot.lane.b32.xlu0 %v1301, 126
        %v1425 = vpop.permute.xlu0 %1424
        %1426 = vrot.lane.b32.xlu0 %v1302, 126
        %v1427 = vpop.permute.xlu0 %1426
        %1428 = vrot.lane.b32.xlu0 %v1303, 126
        %v1429 = vpop.permute.xlu0 %1428
        %1430 = vrot.lane.b32.xlu0 %v1304, 126
        %v1431 = vpop.permute.xlu0 %1430
        %1432 = vrot.lane.b32.xlu0 %v1305, 126
        %v1433 = vpop.permute.xlu0 %1432
        %1434 = vrot.lane.b32.xlu0 %v1306, 126
        %v1435 = vpop.permute.xlu0 %1434
        %1436 = vrot.lane.b32.xlu0 %v1307, 126
        %v1437 = vpop.permute.xlu0 %1436
        %1438 = vrot.lane.b32.xlu0 %v1308, 126
        %v1439 = vpop.permute.xlu0 %1438
        %1440 = vrot.lane.b32.xlu0 %v1309, 126
        %v1441 = vpop.permute.xlu0 %1440
        %1442 = vrot.lane.b32.xlu0 %v1310, 126
        %v1443 = vpop.permute.xlu0 %1442
        %v1444 = vsel %vm591, %v1405, %v1407
        %v1445 = vsel %vm591, %v1407, %v1409
        %v1446 = vsel %vm591, %v1409, %v1411
        %v1447 = vsel %vm591, %v1411, %v1413
        %v1448 = vsel %vm591, %v1415, %v1417
        %v1449 = vsel %vm591, %v1417, %v1419
        %v1450 = vsel %vm591, %v1419, %v1421
        %v1451 = vsel %vm591, %v1421, %v1423
        %v1452 = vsel %vm591, %v1425, %v1427
        %v1453 = vsel %vm591, %v1427, %v1429
        %v1454 = vsel %vm591, %v1429, %v1431
        %v1455 = vsel %vm591, %v1431, %v1433
        %v1456 = vsel %vm591, %v1435, %v1437
        %v1457 = vsel %vm591, %v1437, %v1439
        %v1458 = vsel %vm591, %v1439, %v1441
        %v1459 = vsel %vm591, %v1441, %v1443
        %v1476 = vld [vmem:[#allocation10] sm:$0xff]
        %v1477 = vld [vmem:[#allocation10 + $0x8] sm:$0xff]
        %v1478 = vld [vmem:[#allocation10 + $0x10] sm:$0xff]
        %v1479 = vld [vmem:[#allocation10 + $0x18] sm:$0xff]
        %v1481 = vsel %vm906, %v1476, 0
        %v1484 = vsel %vm906, %v1477, 0
        %v1487 = vsel %vm906, %v1478, 0
        %v1490 = vsel %vm906, %v1479, 0
        %1492 = vmatprep.subr.mxu0 %v1292
        %1493 = vmatpush1.msra.mxu0 %v1291
        %1494 = vmatprep.subr.mxu0 %v1297
        %1495 = vmatpush1.msra.mxu0 %v1296
        %1496 = vmatprep.subr.mxu0 %v1302
        %1497 = vmatpush1.msra.mxu0 %v1301
        %1498 = vmatprep.subr.mxu0 %v1307
        %1499 = vmatpush1.msra.mxu0 %v1306
        %1500 = vmatprep.subr.mxu0 %v1373
        %1501 = vmatpush1.msra.mxu0 %v1372
        %1502 = vmatprep.subr.mxu0 %v1377
        %1503 = vmatpush1.msra.mxu0 %v1376
        %1504 = vmatprep.subr.mxu0 %v1381
        %1505 = vmatpush1.msra.mxu0 %v1380
        %1506 = vmatprep.subr.mxu0 %v1385
        %1507 = vmatpush1.msra.mxu0 %v1384
        %1508 = vmatprep.subr.mxu0 %v1445
        %1509 = vmatpush1.msra.mxu0 %v1444
        %1510 = vmatprep.subr.mxu0 %v1449
        %1511 = vmatpush1.msra.mxu0 %v1448
        %1512 = vmatprep.subr.mxu0 %v1453
        %1513 = vmatpush1.msra.mxu0 %v1452
        %1514 = vmatprep.subr.mxu0 %v1457
        %1515 = vmatpush1.msra.mxu0 %v1456
        %1516 = vmatprep.subr.mxu0 1.0
        %1517 = vmatpush1.msra.mxu0 1.0
        %1518 = vmatprep.subr.mxu0 1.0
        %1519 = vmatpush1.msra.mxu0 1.0
        %1520 = vmatprep.subr.mxu0 0.0
        %1521 = vmatpush1.msra.mxu0 0.0
        %1522 = vmatprep.subr.mxu0 0.0
        %1523 = vmatpush1.msra.mxu0 0.0
        %1524 = vmatprep.subr.mxu0 0.0
        %1525 = vmatpush1.msra.mxu0 0.0
        %1526 = vmatprep.subr.mxu0 0.0
        %1527 = vmatpush1.msra.mxu0 0.0
        %1528 = vmatprep.subr.mxu0 0.0
        %1529 = vmatpush1.msra.mxu0 0.0
        %1530 = vmatprep.subr.mxu0 0.0
        %1531 = vmatpush1.msra.mxu0 0.0
        %1532 = vmatprep.subr.mxu0 0.0
        %1533 = vmatpush1.msra.mxu0 0.0
        %1534 = vmatprep.subr.mxu0 0.0
        %1535 = vmatpush1.msra.mxu0 0.0
        %1536 = vmatprep.subr.mxu0 0.0
        %1537 = vmatpush1.msra.mxu0 0.0
        %1538 = vmatprep.subr.mxu0 0.0
        %1539 = vmatpush1.msra.mxu0 0.0
        %1540 = vmatprep.subr.mxu0 0.0
        %1541 = vmatpush1.msra.mxu0 0.0
        %1542 = vmatprep.subr.mxu0 0.0
        %1543 = vmatpush1.msra.mxu0 0.0
        %1544 = vmatprep.subr.mxu0 0.0
        %1545 = vmatpush1.msra.mxu0 0.0
        %1546 = vmatprep.subr.mxu0 0.0
        %1547 = vmatpush1.msra.mxu0 0.0
        %1548 = vmatprep.subr.mxu0 0.0
        %1549 = vmatpush1.msra.mxu0 0.0
        %1550 = vmatprep.subr.mxu0 0.0
        %1551 = vmatpush1.msra.mxu0 0.0
        %1552 = vmatprep.subr.mxu0 0.0
        %1553 = vmatpush1.msra.mxu0 0.0
        %1554 = vmatprep.subr.mxu0 0.0
        %1555 = vmatpush1.msra.mxu0 0.0
        %1556 = vmatprep.mubr.f32.mxu0 0.0
        %1557 = vmatmul.mubr.f32.gmra.mrb[0].mxu0 %v1481
        %v1558 = vpop.f32.mrb[0].mxu0
        %v1559 = vadd.f32 0.0, %v1558
        %v1560 = vpop.f32.mrb[0].mxu0
        %v1561 = vadd.f32 0.0, %v1560
        %1562 = vmatprep.mubr.f32.mxu0 0.0
        %1563 = vmatmul.mubr.f32.gmra.mrb[0].mxu0 %v1484
        %v1564 = vpop.f32.mrb[0].mxu0
        %v1565 = vadd.f32 0.0, %v1564
        %v1566 = vpop.f32.mrb[0].mxu0
        %v1567 = vadd.f32 0.0, %v1566
        %1568 = vmatprep.mubr.f32.mxu0 0.0
        %1569 = vmatmul.mubr.f32.gmra.mrb[0].mxu0 %v1487
        %v1570 = vpop.f32.mrb[0].mxu0
        %v1571 = vadd.f32 0.0, %v1570
        %v1572 = vpop.f32.mrb[0].mxu0
        %v1573 = vadd.f32 0.0, %v1572
        %1574 = vmatprep.mubr.f32.mxu0 0.0
        %1575 = vmatmul.mubr.f32.gmra.mrb[0].mxu0 %v1490
        %v1576 = vpop.f32.mrb[0].mxu0
        %v1577 = vadd.f32 0.0, %v1576
        %v1578 = vpop.f32.mrb[0].mxu0
        %v1579 = vadd.f32 0.0, %v1578
        %1580 = vdwg.mxu0
        %1581 = vmatprep.subr.mxu0 %v1294
        %1582 = vmatpush1.msra.mxu0 %v1293
        %1583 = vmatprep.subr.mxu0 %v1299
        %1584 = vmatpush1.msra.mxu0 %v1298
        %1585 = vmatprep.subr.mxu0 %v1304
        %1586 = vmatpush1.msra.mxu0 %v1303
        %1587 = vmatprep.subr.mxu0 %v1309
        %1588 = vmatpush1.msra.mxu0 %v1308
        %1589 = vmatprep.subr.mxu0 %v1375
        %1590 = vmatpush1.msra.mxu0 %v1374
        %1591 = vmatprep.subr.mxu0 %v1379
        %1592 = vmatpush1.msra.mxu0 %v1378
        %1593 = vmatprep.subr.mxu0 %v1383
        %1594 = vmatpush1.msra.mxu0 %v1382
        %1595 = vmatprep.subr.mxu0 %v1387
        %1596 = vmatpush1.msra.mxu0 %v1386
        %1597 = vmatprep.subr.mxu0 %v1447
        %1598 = vmatpush1.msra.mxu0 %v1446
        %1599 = vmatprep.subr.mxu0 %v1451
        %1600 = vmatpush1.msra.mxu0 %v1450
        %1601 = vmatprep.subr.mxu0 %v1455
        %1602 = vmatpush1.msra.mxu0 %v1454
        %1603 = vmatprep.subr.mxu0 %v1459
        %1604 = vmatpush1.msra.mxu0 %v1458
        %1605 = vmatprep.subr.mxu0 1.0
        %1606 = vmatpush1.msra.mxu0 1.0
        %1607 = vmatprep.subr.mxu0 1.0
        %1608 = vmatpush1.msra.mxu0 1.0
        %1609 = vmatprep.subr.mxu0 0.0
        %1610 = vmatpush1.msra.mxu0 0.0
        %1611 = vmatprep.subr.mxu0 0.0
        %1612 = vmatpush1.msra.mxu0 0.0
        %1613 = vmatprep.subr.mxu0 0.0
        %1614 = vmatpush1.msra.mxu0 0.0
        %1615 = vmatprep.subr.mxu0 0.0
        %1616 = vmatpush1.msra.mxu0 0.0
        %1617 = vmatprep.subr.mxu0 0.0
        %1618 = vmatpush1.msra.mxu0 0.0
        %1619 = vmatprep.subr.mxu0 0.0
        %1620 = vmatpush1.msra.mxu0 0.0
        %1621 = vmatprep.subr.mxu0 0.0
        %1622 = vmatpush1.msra.mxu0 0.0
        %1623 = vmatprep.subr.mxu0 0.0
        %1624 = vmatpush1.msra.mxu0 0.0
        %1625 = vmatprep.subr.mxu0 0.0
        %1626 = vmatpush1.msra.mxu0 0.0
        %1627 = vmatprep.subr.mxu0 0.0
        %1628 = vmatpush1.msra.mxu0 0.0
        %1629 = vmatprep.subr.mxu0 0.0
        %1630 = vmatpush1.msra.mxu0 0.0
        %1631 = vmatprep.subr.mxu0 0.0
        %1632 = vmatpush1.msra.mxu0 0.0
        %1633 = vmatprep.subr.mxu0 0.0
        %1634 = vmatpush1.msra.mxu0 0.0
        %1635 = vmatprep.subr.mxu0 0.0
        %1636 = vmatpush1.msra.mxu0 0.0
        %1637 = vmatprep.subr.mxu0 0.0
        %1638 = vmatpush1.msra.mxu0 0.0
        %1639 = vmatprep.subr.mxu0 0.0
        %1640 = vmatpush1.msra.mxu0 0.0
        %1641 = vmatprep.subr.mxu0 0.0
        %1642 = vmatpush1.msra.mxu0 0.0
        %1643 = vmatprep.subr.mxu0 0.0
        %1644 = vmatpush1.msra.mxu0 0.0
        %1645 = vmatprep.mubr.f32.mxu0 0.0
        %1646 = vmatmul.mubr.f32.gmra.mrb[0].mxu0 %v1481
        %v1647 = vpop.f32.mrb[0].mxu0
        %v1648 = vadd.f32 0.0, %v1647
        %v1649 = vpop.f32.mrb[0].mxu0
        %v1650 = vadd.f32 0.0, %v1649
        %1651 = vmatprep.mubr.f32.mxu0 0.0
        %1652 = vmatmul.mubr.f32.gmra.mrb[0].mxu0 %v1484
        %v1653 = vpop.f32.mrb[0].mxu0
        %v1654 = vadd.f32 0.0, %v1653
        %v1655 = vpop.f32.mrb[0].mxu0
        %v1656 = vadd.f32 0.0, %v1655
        %1657 = vmatprep.mubr.f32.mxu0 0.0
        %1658 = vmatmul.mubr.f32.gmra.mrb[0].mxu0 %v1487
        %v1659 = vpop.f32.mrb[0].mxu0
        %v1660 = vadd.f32 0.0, %v1659
        %v1661 = vpop.f32.mrb[0].mxu0
        %v1662 = vadd.f32 0.0, %v1661
        %1663 = vmatprep.mubr.f32.mxu0 0.0
        %1664 = vmatmul.mubr.f32.gmra.mrb[0].mxu0 %v1490
        %v1665 = vpop.f32.mrb[0].mxu0
        %v1666 = vadd.f32 0.0, %v1665
        %v1667 = vpop.f32.mrb[0].mxu0
        %v1668 = vadd.f32 0.0, %v1667
        %1669 = vdwg.mxu0
        %v1670 = vadd.f32 %v407, %v1559
        %v1671 = vadd.f32 %v408, %v1561
        %v1672 = vadd.f32 %v409, %v1648
        %v1673 = vadd.f32 %v410, %v1650
        %v1674 = vadd.f32 %v411, %v1565
        %v1675 = vadd.f32 %v412, %v1567
        %v1676 = vadd.f32 %v413, %v1654
        %v1677 = vadd.f32 %v414, %v1656
        %v1678 = vadd.f32 %v415, %v1571
        %v1679 = vadd.f32 %v416, %v1573
        %v1680 = vadd.f32 %v417, %v1660
        %v1681 = vadd.f32 %v418, %v1662
        %v1682 = vadd.f32 %v419, %v1577
        %v1683 = vadd.f32 %v420, %v1579
        %v1684 = vadd.f32 %v421, %v1666
        %v1685 = vadd.f32 %v422, %v1668
        %1686 = vst [vmem:[%s396] sm:$0xff] %v1670
        %1687 = vst [vmem:[%s396 + $0x8] sm:$0xff] %v1671
        %1688 = vst [vmem:[%s396 + $0x10] sm:$0xff] %v1672
        %1689 = vst [vmem:[%s396 + $0x18] sm:$0xff] %v1673
        %1690 = vst [vmem:[%s396 + $0x20] sm:$0xff] %v1674
        %1691 = vst [vmem:[%s396 + $0x28] sm:$0xff] %v1675
        %1692 = vst [vmem:[%s396 + $0x30] sm:$0xff] %v1676
        %1693 = vst [vmem:[%s396 + $0x38] sm:$0xff] %v1677
        %1694 = vst [vmem:[%s396 + $0x40] sm:$0xff] %v1678
        %1695 = vst [vmem:[%s396 + $0x48] sm:$0xff] %v1679
        %1696 = vst [vmem:[%s396 + $0x50] sm:$0xff] %v1680
        %1697 = vst [vmem:[%s396 + $0x58] sm:$0xff] %v1681
        %1698 = vst [vmem:[%s396 + $0x60] sm:$0xff] %v1682
        %1699 = vst [vmem:[%s396 + $0x68] sm:$0xff] %v1683
        %1700 = vst [vmem:[%s396 + $0x70] sm:$0xff] %v1684
        %1701 = vst [vmem:[%s396 + $0x78] sm:$0xff] %v1685
        %s1702 = sand.u32 %s190, 1
        %s1703 = scalar_lea.sflag [#allocation4], %s1702
        %s1704 = sand.u32 %s190, 1
        %s1705 = smul.addr %s1704, 128
        %s1706 = scalar_lea.vmem [#allocation11], %s1705
        // Predicated region
        $region61: #{tpu_custom_call.1} parent=39 // pred_check
          %p1707 = pneg %p200
        $region62: #{tpu_custom_call.1} parent=39 // pred_check_branch
          %1709 = sbr.rel (%p1707) target = $region64
        $region63: #{tpu_custom_call.1} parent=39 // pred_region
          %s1710 = smul.u32 4, %s31
          %s1712 = ssub.s32 2048, 2048
          %1713 = vsyncadd %s1703, %s1712
          %s1714 = smul.addr %s30, 48
          %s1715 = sadd.s32 %s1710, %s1714
          %s1716 = smul.addr %s1715, 128
          %s1717 = scalar_lea.hbm %s5, %s1716
          %s1718 = sshll.u32 %s1706, 4
          %s1719 = int_to_ptr.vmem [resolvable:$true] %s1718
          %1724 = dma.vmem_to_hbm [thread:$0]  %s1719, 2048, %s1717, %s1703, 512, 1536, 32
        $region64: #{tpu_custom_call.1} parent=39 // pred_fallthru
          _
      $region40: #{tpu_custom_call.1} parent=5 // pred_fallthru
        _
      %p1725 = scmp.le.s32.totalorder 2, %s21
      // Predicated region
      $region65: #{tpu_custom_call.1} parent=5 // pred_check
        %p1726 = pneg %p1725
      $region66: #{tpu_custom_call.1} parent=5 // pred_check_branch
        %1728 = sbr.rel (%p1726) target = $region68
      $region67: #{tpu_custom_call.1} parent=5 // pred_region
        %s1729 = ssub.s32 %s21, 2
        // Predicated region
        $region69: #{tpu_custom_call.1} parent=67 // pred_check
          %p1730 = pneg %p206
        $region70: #{tpu_custom_call.1} parent=67 // pred_check_branch
          %1732 = sbr.rel (%p1730) target = $region72
        $region71: #{tpu_custom_call.1} parent=67 // pred_region
          %s1733 = sand.u32 %s191, 1
          %s1734 = scalar_lea.sflag [#allocation4], %s1733
          %s1735 = sand.u32 %s191, 1
          %s1736 = smul.addr %s1735, 128
          %s1737 = scalar_lea.vmem [#allocation11], %s1736
          %1738 = dma.done %s1734, 2048
        $region72: #{tpu_custom_call.1} parent=67 // pred_fallthru
          _
      $region68: #{tpu_custom_call.1} parent=5 // pred_fallthru
        _
    $region6: #{tpu_custom_call.1} parent=1 // loop_footer
      %s25 = sadd.s32 1, %s21
    $region7: #{tpu_custom_call.1} parent=1 // loop_footer_branch
      %20 = sbr.rel target = $region3
    $region8: #{tpu_custom_call.1} parent=1 // loop_exit
      _
    %1739 = vsyncpa [#allocation3], 1
    %s1740 = scalar_lea.sflag [#allocation3], 1
    %1741 = vsyncpa %s1740, 1
    %1742 = vsyncpa [#allocation6], 1
    %s1743 = scalar_lea.sflag [#allocation6], 1
    %1744 = vsyncpa %s1743, 1
    %1745 = vsyncpa [#allocation9], 1
    %1746 = vsyncpa [#allocation4], 1
    %s1747 = scalar_lea.sflag [#allocation4], 1
    %1748 = vsyncpa %s1747, 1

</llo_original>
